<compile_context>
chip_gen: v7x
topology: tpu7x:2x2x1
jax: 0.10.0
libtpu: 0.0.40
codegen_flags: <defaults>
</compile_context>

<pallas_src>
import functools

import jax
import jax.numpy as jnp
from jax.experimental import pallas as pl
from jax.experimental.pallas import tpu as pltpu


EPS = 1e-5  # PyTorch GroupNorm default


# ----------------------------------------------------------------------------
# Kernel
# ----------------------------------------------------------------------------
def _classification_head_kernel(
    x_ref,                      # (rows_t, s_tile)  pooling tile, native dtype
    red_ref,                    # (s_tile, acc_w)   first-column-ones (MXU path)
    unfb_ref, unfc_ref,         # (b_tile, rows_t), (rows_t, C)  (1/S in unfc)
    w1_ref, b1_ref,             # (C, 256), (1, 256)
    ga1_ref, be1_ref,           # (1, 256), (1, 256)
    gm1_ref, gt1_ref,           # (256, 32)*1/gs, (32, 256) one-hot
    w2_ref, b2_ref,             # (256, 128), (1, 128)
    ga2_ref, be2_ref,           # (1, 128), (1, 128)
    gm2_ref, gt2_ref,           # (128, 16)*1/gs, (16, 128) one-hot
    w3_ref, b3_ref,             # (128, NC_PAD), (1, NC_PAD)
    o_ref,                      # (b_tile, NC_PAD)
    acc_ref,                    # (rows_t, acc_w) f32 scratch: partial row sums
    *, last_valid, use_mxu_reduce):
    s = pl.program_id(1)
    n_s = pl.num_programs(1)
    s_tile = x_ref.shape[1]
    acc_w = acc_ref.shape[1]

    @pl.when(s == 0)
    def _init():
        acc_ref[...] = jnp.zeros_like(acc_ref)

    # ---- pooling: accumulate per-row spatial sums ---------------------------
    def accumulate(xv):
        if use_mxu_reduce:
            # MXU reduce: dot against a matrix whose first column is ones.
            # acc lane 0 carries the running sum; keeps the VPU free.
            acc_ref[...] += jnp.dot(xv, red_ref[...],
                                    preferred_element_type=jnp.float32)
        else:
            # VPU lane-block accumulate (f32 inputs: trivially hidden by DMA).
            total = acc_ref[...]
            xf = xv.astype(jnp.float32)
            for j in range(0, s_tile, acc_w):
                total = total + xf[:, j:j + acc_w]
            acc_ref[...] = total

    if last_valid is None:
        # s_tile tiles the reduced spatial dim exactly -> no masking needed.
        accumulate(x_ref[...])
    else:
        @pl.when(s != n_s - 1)
        def _full_tile():
            accumulate(x_ref[...])

        @pl.when(s == n_s - 1)
        def _partial_tile():
            x = x_ref[...]
            lane = jax.lax.broadcasted_iota(jnp.int32, x.shape, 1)
            accumulate(jnp.where(lane < last_valid, x, jnp.zeros_like(x)))

    # ---- head: runs once per batch tile, on the last reduction step ---------
    @pl.when(s == n_s - 1)
    def _head():
        # Sum the acc lanes once (XLU) -> exact per-row spatial sums.
        row_sums = jnp.sum(acc_ref[...], axis=-1, keepdims=True)   # (rows_t, 1)
        # (rows_t, 1) sums -> (b_tile, C) means via constant one-hot matmuls
        # (unfc already carries the 1/S factor; no in-kernel reshape/divide).
        pooled = jnp.dot(unfb_ref[...], row_sums * unfc_ref[...],
                         preferred_element_type=jnp.float32)        # (b_tile, C)

        def group_norm(h, gm, gt, gamma, beta):
            # Centered two-pass variance (numerically safer than E[x^2]-E[x]^2).
            mg = jnp.dot(h, gm, preferred_element_type=jnp.float32)      # group mean
            mu = jnp.dot(mg, gt, preferred_element_type=jnp.float32)     # -> channels
            d = h - mu
            var = jnp.dot(d * d, gm, preferred_element_type=jnp.float32)  # biased var
            scale = jnp.dot(jax.lax.rsqrt(var + EPS), gt,
                            preferred_element_type=jnp.float32)
            return d * scale * gamma + beta

        # fc1 + GroupNorm(32, 256) + ReLU
        h = jnp.dot(pooled, w1_ref[...], preferred_element_type=jnp.float32) + b1_ref[...]
        h = jnp.maximum(
            group_norm(h, gm1_ref[...], gt1_ref[...], ga1_ref[...], be1_ref[...]), 0.0)
        # dropout1: identity (eval mode)

        # fc2 + GroupNorm(16, 128) + ReLU
        h = jnp.dot(h, w2_ref[...], preferred_element_type=jnp.float32) + b2_ref[...]
        h = jnp.maximum(
            group_norm(h, gm2_ref[...], gt2_ref[...], ga2_ref[...], be2_ref[...]), 0.0)
        # dropout2: identity (eval mode)

        # fc3 (lane-dense 128-wide padded output; wrapper slices num_classes)
        out = jnp.dot(h, w3_ref[...], preferred_element_type=jnp.float32) + b3_ref[...]
        o_ref[...] = out.astype(o_ref.dtype)


# ----------------------------------------------------------------------------
# Trace-time planning helpers
# ----------------------------------------------------------------------------
def _group_matrix(num_channels, num_groups):
    gs = num_channels // num_groups
    ch = jnp.arange(num_channels)
    return (ch[:, None] // gs == jnp.arange(num_groups)[None, :]).astype(jnp.float32)


def _choose_b_tile(B):
    """Smallest multiple-of-8 divisor of B that gives >=2 batch tiles (so the
    'parallel' grid axis can be spread across TensorCores); otherwise B."""
    bt = 8
    while bt * 2 <= B:
        if B % bt == 0:
            return bt
        bt += 8
    return B


def _choose_fold(C, S, b_tile, row_cap=1024, min_lanes=128):
    """Fold factor k (divides S): reshape (B*C, S) -> (B*C*k, S//k) so row
    tiles are tall enough for good sublane/DMA efficiency when B*C is small.
    Keeps L = S//k >= 128 and rows <= row_cap; prefers rows % 8 == 0."""
    base = max(1, b_tile * C)
    kmax = min(S // min_lanes if S >= min_lanes else 1, max(row_cap // base, 1))
    cand = [k for k in range(1, max(kmax, 1) + 1) if S % k == 0]
    if not cand:
        return 1
    aligned = [k for k in cand if (base * k) % 8 == 0]
    return max(aligned) if aligned else max(cand)


def _choose_s_tile(L, rows_t, itemsize, max_tile_bytes=4 << 20, max_lanes=8192):
    """Lane width of the pooling DMA tile.  Always legal:
       - L <= 128: the full (possibly narrow) last dim in one step.
       - else: a multiple of 128 sized from the byte budget; the S grid uses
         cdiv and the kernel masks the trailing partial tile (no divisibility
         requirement, no oversized fallback)."""
    if L <= 128:
        return L
    budget_lanes = max(128, (max_tile_bytes // max(1, rows_t * itemsize)) // 128 * 128)
    full_lanes = (L // 128) * 128          # keep blocks inside the array's last dim
    return int(min(budget_lanes, full_lanes, max_lanes))


def _x_block_spec(rows_t, s_tile, deep):
    if deep:
        try:
            return pl.BlockSpec((rows_t, s_tile), lambda b, s: (b, s),
                                pipeline_mode=pl.Buffered(3))
        except TypeError:          # older BlockSpec without pipeline_mode
            pass
    return pl.BlockSpec((rows_t, s_tile), lambda b, s: (b, s))


# ----------------------------------------------------------------------------
# Wrapper
# ----------------------------------------------------------------------------
@functools.partial(jax.jit, static_argnames=("num_classes",))
def classification_head(x_ncdhw, params, num_classes=3):
    B, C, D, H, W = x_ncdhw.shape
    S = D * H * W
    itemsize = x_ncdhw.dtype.itemsize

    # ---- layout plan ---------------------------------------------------------
    b_tile = _choose_b_tile(B)
    k = _choose_fold(C, S, b_tile)
    L = S // k
    rows_total = B * C * k
    rows_t = b_tile * C * k
    s_tile = _choose_s_tile(L, rows_t, itemsize)
    n_s = -(-L // s_tile)                        # cdiv
    last_valid = L - (n_s - 1) * s_tile
    needs_mask = last_valid != s_tile
    acc_w = min(128, s_tile)

    # bf16 (packed) inputs -> MXU reduce (keeps the VPU idle, exact since the
    # "weights" are ones); f32 inputs -> VPU lane-block accumulate (exact f32,
    # comfortably hidden under the f32 HBM stream on every generation).
    use_mxu_reduce = jnp.issubdtype(x_ncdhw.dtype, jnp.floating) and itemsize <= 2

    # Keep the producer's dtype: do NOT cast here (a standalone cast is itself
    # an HBM-bound pass and would cost more than it saves).
    x2d = x_ncdhw.reshape(rows_total, L)

    nc_pad = ((num_classes + 127) // 128) * 128

    # ---- trace-time constants (XLA folds them) -------------------------------
    gm1 = _group_matrix(256, 32) * (1.0 / (256 // 32))   # 1/group_size baked in
    gt1 = _group_matrix(256, 32).T
    gm2 = _group_matrix(128, 16) * (1.0 / (128 // 16))
    gt2 = _group_matrix(128, 16).T

    # Unflatten (rows_t, 1) sums -> (b_tile, C) means; 1/S baked into unfc.
    r = jnp.arange(rows_t)
    unfb = ((r[None, :] // (C * k)) == jnp.arange(b_tile)[:, None]).astype(jnp.float32)
    unfc = (((r[:, None] // k) % C) == jnp.arange(C)[None, :]).astype(jnp.float32) * (1.0 / S)

    # Reduction matrix for the MXU path (first column = 1).  A tiny dummy is
    # passed (and ignored) on the VPU path to keep the kernel signature fixed.
    if use_mxu_reduce:
        red = jnp.zeros((s_tile, acc_w), x2d.dtype).at[:, 0].set(1)
    else:
        red = jnp.zeros((8, 128), x2d.dtype)

    # Lane-dense padded fc3 weights.
    w3p = jnp.zeros((128, nc_pad), jnp.float32).at[:, :num_classes].set(params["w3"])
    b3p = jnp.zeros((1, nc_pad), jnp.float32).at[:, :num_classes].set(params["b3"])

    operands = (
        x2d, red, unfb, unfc,
        params["w1"], params["b1"], params["gamma1"], params["beta1"], gm1, gt1,
        params["w2"], params["b2"], params["gamma2"], params["beta2"], gm2, gt2,
        w3p, b3p,
    )

    def _resident(arr):
        # Full-shape block, constant index map -> stays resident in VMEM.
        return pl.BlockSpec(arr.shape, lambda b, s: (0, 0))

    # ---- pipeline depth & VMEM budget ----------------------------------------
    x_tile_bytes = rows_t * s_tile * itemsize
    total_steps = (B // b_tile) * n_s
    deep = (x_tile_bytes < (1 << 20)) and (total_steps >= 3)
    n_buf = 3 if deep else 2

    resident_bytes = sum(a.size * a.dtype.itemsize for a in operands[1:])
    out_bytes = b_tile * nc_pad * 4
    acc_bytes = rows_t * acc_w * 4
    vmem_limit = n_buf * x_tile_bytes + 2 * (resident_bytes + out_bytes) + acc_bytes + (4 << 20)
    vmem_limit = int(min(max(vmem_limit, 8 << 20), 48 << 20))   # v7x-safe cap

    in_specs = [_x_block_spec(rows_t, s_tile, deep)]
    in_specs += [_resident(a) for a in operands[1:]]
    out_spec = pl.BlockSpec((b_tile, nc_pad), lambda b, s: (b, 0))

    kernel = functools.partial(
        _classification_head_kernel,
        last_valid=(last_valid if needs_mask else None),
        use_mxu_reduce=use_mxu_reduce,
    )

    out = pl.pallas_call(
        kernel,
        out_shape=jax.ShapeDtypeStruct((B, nc_pad), jnp.float32),
        grid=(B // b_tile, n_s),
        in_specs=in_specs,
        out_specs=out_spec,
        scratch_shapes=[pltpu.VMEM((rows_t, acc_w), jnp.float32)],
        compiler_params=pltpu.CompilerParams(
            dimension_semantics=("parallel", "arbitrary"),
            vmem_limit_bytes=vmem_limit,
        ),
    )(*operands)
    return out[:, :num_classes]


# ----------------------------------------------------------------------------
# Reference + params
# ----------------------------------------------------------------------------
def init_params(key, in_channels, num_classes=3):
    ks = jax.random.split(key, 8)
    scale = 0.05
    return {
        "w1": jax.random.normal(ks[0], (in_channels, 256), jnp.float32) * scale,
        "b1": jax.random.normal(ks[1], (1, 256), jnp.float32) * scale,
        "gamma1": 1.0 + jax.random.normal(ks[2], (1, 256), jnp.float32) * scale,
        "beta1": jax.random.normal(ks[3], (1, 256), jnp.float32) * scale,
        "w2": jax.random.normal(ks[4], (256, 128), jnp.float32) * scale,
        "b2": jax.random.normal(ks[5], (1, 128), jnp.float32) * scale,
        "gamma2": 1.0 + jax.random.normal(ks[6], (1, 128), jnp.float32) * scale,
        "beta2": jax.random.normal(ks[7], (1, 128), jnp.float32) * scale,
        "w3": jax.random.normal(jax.random.fold_in(key, 99), (128, num_classes),
                                jnp.float32) * scale,
        "b3": jax.random.normal(jax.random.fold_in(key, 100), (1, num_classes),
                                jnp.float32) * scale,
    }


def _reference(x_ncdhw, params):
    # Pure-JAX reference replicating the PyTorch forward (eval mode).
    B, C = x_ncdhw.shape[0], x_ncdhw.shape[1]
    h = jnp.mean(x_ncdhw.reshape(B, C, -1).astype(jnp.float32), axis=-1)

    def gn(h, n_groups, gamma, beta):
        Bn, F = h.shape
        hg = h.reshape(Bn, n_groups, F // n_groups)
        m = hg.mean(axis=-1, keepdims=True)
        v = hg.var(axis=-1, keepdims=True)
        hn = ((hg - m) / jnp.sqrt(v + EPS)).reshape(Bn, F)
        return hn * gamma + beta

    h = h @ params["w1"] + params["b1"]
    h = jnp.maximum(gn(h, 32, params["gamma1"], params["beta1"]), 0.0)
    h = h @ params["w2"] + params["b2"]
    h = jnp.maximum(gn(h, 16, params["gamma2"], params["beta2"]), 0.0)
    return h @ params["w3"] + params["b3"]


# ----------------------------------------------------------------------------
# Demo
# ----------------------------------------------------------------------------
if __name__ == "__main__":
    key = jax.random.PRNGKey(0)
    k_x, k_p = jax.random.split(key)

    num_classes = 3
    C = 4
    params = init_params(k_p, in_channels=C, num_classes=num_classes)

    # (shape, dtype, atol/rtol): exercise the single-tile f32/VPU path, the
    # cdiv + masked-partial-tile path (S = 500), and the bf16 MXU-reduce path.
    configs = [
        ((2, C, 4, 8, 16), jnp.float32, 1e-4),
        ((2, C, 5, 10, 10), jnp.float32, 1e-4),
        ((2, C, 4, 8, 16), jnp.bfloat16, 1e-3),
    ]

    for shape, dtype, tol in configs:
        x = jax.random.normal(jax.random.fold_in(k_x, hash(shape) % 1000),
                              shape, jnp.float32).astype(dtype)
        out = classification_head(x, params, num_classes=num_classes)
        out = jax.block_until_ready(out)
        ref = _reference(x, params)
        assert out.shape == (shape[0], num_classes)
        assert jnp.allclose(out, ref, atol=tol, rtol=tol), (shape, dtype, out, ref)

    print("KERNEL_OK")
</pallas_src>

<mosaic_0001>
module attributes {stable_mosaic.version = 11 : i64} {
  func.func @_classification_head_kernel(%arg0: i32, %arg1: i32, %arg2: memref<32x128xf32, #tpu.memory_space<vmem>>, %arg3: memref<8x128xf32, #tpu.memory_space<vmem>>, %arg4: memref<2x32xf32, #tpu.memory_space<vmem>>, %arg5: memref<32x4xf32, #tpu.memory_space<vmem>>, %arg6: memref<4x256xf32, #tpu.memory_space<vmem>>, %arg7: memref<1x256xf32, #tpu.memory_space<vmem>>, %arg8: memref<1x256xf32, #tpu.memory_space<vmem>>, %arg9: memref<1x256xf32, #tpu.memory_space<vmem>>, %arg10: memref<256x32xf32, #tpu.memory_space<vmem>>, %arg11: memref<32x256xf32, #tpu.memory_space<vmem>>, %arg12: memref<256x128xf32, #tpu.memory_space<vmem>>, %arg13: memref<1x128xf32, #tpu.memory_space<vmem>>, %arg14: memref<1x128xf32, #tpu.memory_space<vmem>>, %arg15: memref<1x128xf32, #tpu.memory_space<vmem>>, %arg16: memref<128x16xf32, #tpu.memory_space<vmem>>, %arg17: memref<16x128xf32, #tpu.memory_space<vmem>>, %arg18: memref<128x128xf32, #tpu.memory_space<vmem>>, %arg19: memref<1x128xf32, #tpu.memory_space<vmem>>, %arg20: memref<2x128xf32, #tpu.memory_space<vmem>>, %arg21: memref<32x128xf32, #tpu.memory_space<vmem>>) attributes {dimension_semantics = [#tpu.dimension_semantics<parallel>, #tpu.dimension_semantics<arbitrary>], iteration_bounds = array<i64: 1, 1>, scalar_prefetch = 0 : i64, scratch_operands = 1 : i64, tpu.core_type = #tpu.core_type<tc>, window_params = [{transform_indices = @transform_0, window_bounds = array<i64: 32, 128>}, {pipeline_mode = #tpu.pipeline_mode<synchronous>, transform_indices = @transform_1, window_bounds = array<i64: 8, 128>}, {pipeline_mode = #tpu.pipeline_mode<synchronous>, transform_indices = @transform_2, window_bounds = array<i64: 2, 32>}, {pipeline_mode = #tpu.pipeline_mode<synchronous>, transform_indices = @transform_3, window_bounds = array<i64: 32, 4>}, {pipeline_mode = #tpu.pipeline_mode<synchronous>, transform_indices = @transform_4, window_bounds = array<i64: 4, 256>}, {pipeline_mode = #tpu.pipeline_mode<synchronous>, transform_indices = @transform_5, window_bounds = array<i64: 1, 256>}, {pipeline_mode = #tpu.pipeline_mode<synchronous>, transform_indices = @transform_6, window_bounds = array<i64: 1, 256>}, {pipeline_mode = #tpu.pipeline_mode<synchronous>, transform_indices = @transform_7, window_bounds = array<i64: 1, 256>}, {pipeline_mode = #tpu.pipeline_mode<synchronous>, transform_indices = @transform_8, window_bounds = array<i64: 256, 32>}, {pipeline_mode = #tpu.pipeline_mode<synchronous>, transform_indices = @transform_9, window_bounds = array<i64: 32, 256>}, {pipeline_mode = #tpu.pipeline_mode<synchronous>, transform_indices = @transform_10, window_bounds = array<i64: 256, 128>}, {pipeline_mode = #tpu.pipeline_mode<synchronous>, transform_indices = @transform_11, window_bounds = array<i64: 1, 128>}, {pipeline_mode = #tpu.pipeline_mode<synchronous>, transform_indices = @transform_12, window_bounds = array<i64: 1, 128>}, {pipeline_mode = #tpu.pipeline_mode<synchronous>, transform_indices = @transform_13, window_bounds = array<i64: 1, 128>}, {pipeline_mode = #tpu.pipeline_mode<synchronous>, transform_indices = @transform_14, window_bounds = array<i64: 128, 16>}, {pipeline_mode = #tpu.pipeline_mode<synchronous>, transform_indices = @transform_15, window_bounds = array<i64: 16, 128>}, {pipeline_mode = #tpu.pipeline_mode<synchronous>, transform_indices = @transform_16, window_bounds = array<i64: 128, 128>}, {pipeline_mode = #tpu.pipeline_mode<synchronous>, transform_indices = @transform_17, window_bounds = array<i64: 1, 128>}, {transform_indices = @transform_18, window_bounds = array<i64: 2, 128>}]} {
    %c0_i32 = arith.constant 0 : i32
    %0 = arith.cmpi eq, %arg1, %c0_i32 : i32
    %1 = arith.extui %0 : i1 to i32
    %c0_i32_0 = arith.constant 0 : i32
    %2 = arith.cmpi ne, %1, %c0_i32_0 : i32
    scf.if %2 {
      %cst = arith.constant 0.000000e+00 : f32
      %10 = vector.broadcast %cst : f32 to vector<32x128xf32>
      %c0_8 = arith.constant 0 : index
      %c0_9 = arith.constant 0 : index
      %11 = vector.load %arg21[%c0_8, %c0_9] : memref<32x128xf32, #tpu.memory_space<vmem>>, vector<32x128xf32>
      tpu.vector_store %arg21[%c0_8, %c0_9], %10 {strides = array<i32>} : memref<32x128xf32, #tpu.memory_space<vmem>>, vector<32x128xf32>,
    } else {
    }
    %c0 = arith.constant 0 : index
    %c0_1 = arith.constant 0 : index
    %3 = vector.load %arg2[%c0, %c0_1] : memref<32x128xf32, #tpu.memory_space<vmem>>, vector<32x128xf32>
    %c0_2 = arith.constant 0 : index
    %c0_3 = arith.constant 0 : index
    %4 = vector.load %arg21[%c0_2, %c0_3] : memref<32x128xf32, #tpu.memory_space<vmem>>, vector<32x128xf32>
    %5 = arith.addf %4, %3 : vector<32x128xf32>
    %c0_4 = arith.constant 0 : index
    %c0_5 = arith.constant 0 : index
    %6 = vector.load %arg21[%c0_4, %c0_5] : memref<32x128xf32, #tpu.memory_space<vmem>>, vector<32x128xf32>
    tpu.vector_store %arg21[%c0_4, %c0_5], %5 {strides = array<i32>} : memref<32x128xf32, #tpu.memory_space<vmem>>, vector<32x128xf32>,
    %c0_i32_6 = arith.constant 0 : i32
    %7 = arith.cmpi eq, %arg1, %c0_i32_6 : i32
    %8 = arith.extui %7 : i1 to i32
    %c0_i32_7 = arith.constant 0 : i32
    %9 = arith.cmpi ne, %8, %c0_i32_7 : i32
    scf.if %9 {
      %c0_8 = arith.constant 0 : index
      %c0_9 = arith.constant 0 : index
      %10 = vector.load %arg21[%c0_8, %c0_9] : memref<32x128xf32, #tpu.memory_space<vmem>>, vector<32x128xf32>
      %cst = arith.constant dense<0.000000e+00> : vector<32xf32>
      %11 = vector.multi_reduction <add>, %10, %cst [1] : vector<32x128xf32> to vector<32xf32>
      %12 = vector.shape_cast %11 : vector<32xf32> to vector<32x1xf32>
      %c0_10 = arith.constant 0 : index
      %c0_11 = arith.constant 0 : index
      %13 = vector.load %arg4[%c0_10, %c0_11] : memref<2x32xf32, #tpu.memory_space<vmem>>, vector<2x32xf32>
      %c0_12 = arith.constant 0 : index
      %c0_13 = arith.constant 0 : index
      %14 = vector.load %arg5[%c0_12, %c0_13] : memref<32x4xf32, #tpu.memory_space<vmem>>, vector<32x4xf32>
      %15 = vector.broadcast %12 : vector<32x1xf32> to vector<32x4xf32>
      %16 = arith.mulf %15, %14 : vector<32x4xf32>
      %cst_14 = arith.constant dense<0.000000e+00> : vector<2x4xf32>
      %17 = tpu.matmul %13, %16, %cst_14 {dimension_numbers = #tpu.dot_dimension_numbers<[1], [0], [0], [1], [0, 0, 1, 1], [], []>} : vector<2x32xf32>, vector<32x4xf32>, vector<2x4xf32> -> vector<2x4xf32>
      %c0_15 = arith.constant 0 : index
      %c0_16 = arith.constant 0 : index
      %18 = vector.load %arg6[%c0_15, %c0_16] : memref<4x256xf32, #tpu.memory_space<vmem>>, vector<4x256xf32>
      %cst_17 = arith.constant dense<0.000000e+00> : vector<2x256xf32>
      %19 = tpu.matmul %17, %18, %cst_17 {dimension_numbers = #tpu.dot_dimension_numbers<[1], [0], [0], [1], [0, 0, 1, 1], [], []>} : vector<2x4xf32>, vector<4x256xf32>, vector<2x256xf32> -> vector<2x256xf32>
      %c0_18 = arith.constant 0 : index
      %c0_19 = arith.constant 0 : index
      %20 = vector.load %arg7[%c0_18, %c0_19] : memref<1x256xf32, #tpu.memory_space<vmem>>, vector<1x256xf32>
      %21 = vector.broadcast %20 : vector<1x256xf32> to vector<2x256xf32>
      %22 = arith.addf %19, %21 : vector<2x256xf32>
      %c0_20 = arith.constant 0 : index
      %c0_21 = arith.constant 0 : index
      %23 = vector.load %arg10[%c0_20, %c0_21] : memref<256x32xf32, #tpu.memory_space<vmem>>, vector<256x32xf32>
      %c0_22 = arith.constant 0 : index
      %c0_23 = arith.constant 0 : index
      %24 = vector.load %arg11[%c0_22, %c0_23] : memref<32x256xf32, #tpu.memory_space<vmem>>, vector<32x256xf32>
      %c0_24 = arith.constant 0 : index
      %c0_25 = arith.constant 0 : index
      %25 = vector.load %arg8[%c0_24, %c0_25] : memref<1x256xf32, #tpu.memory_space<vmem>>, vector<1x256xf32>
      %c0_26 = arith.constant 0 : index
      %c0_27 = arith.constant 0 : index
      %26 = vector.load %arg9[%c0_26, %c0_27] : memref<1x256xf32, #tpu.memory_space<vmem>>, vector<1x256xf32>
      %cst_28 = arith.constant dense<0.000000e+00> : vector<2x32xf32>
      %27 = tpu.matmul %22, %23, %cst_28 {dimension_numbers = #tpu.dot_dimension_numbers<[1], [0], [0], [1], [0, 0, 1, 1], [], []>} : vector<2x256xf32>, vector<256x32xf32>, vector<2x32xf32> -> vector<2x32xf32>
      %cst_29 = arith.constant dense<0.000000e+00> : vector<2x256xf32>
      %28 = tpu.matmul %27, %24, %cst_29 {dimension_numbers = #tpu.dot_dimension_numbers<[1], [0], [0], [1], [0, 0, 1, 1], [], []>} : vector<2x32xf32>, vector<32x256xf32>, vector<2x256xf32> -> vector<2x256xf32>
      %29 = arith.subf %22, %28 : vector<2x256xf32>
      %30 = arith.mulf %29, %29 : vector<2x256xf32>
      %cst_30 = arith.constant dense<0.000000e+00> : vector<2x32xf32>
      %31 = tpu.matmul %30, %23, %cst_30 {dimension_numbers = #tpu.dot_dimension_numbers<[1], [0], [0], [1], [0, 0, 1, 1], [], []>} : vector<2x256xf32>, vector<256x32xf32>, vector<2x32xf32> -> vector<2x32xf32>
      %cst_31 = arith.constant 9.99999974E-6 : f32
      %32 = vector.broadcast %cst_31 : f32 to vector<2x32xf32>
      %33 = arith.addf %31, %32 : vector<2x32xf32>
      %34 = math.rsqrt %33 : vector<2x32xf32>
      %cst_32 = arith.constant dense<0.000000e+00> : vector<2x256xf32>
      %35 = tpu.matmul %34, %24, %cst_32 {dimension_numbers = #tpu.dot_dimension_numbers<[1], [0], [0], [1], [0, 0, 1, 1], [], []>} : vector<2x32xf32>, vector<32x256xf32>, vector<2x256xf32> -> vector<2x256xf32>
      %36 = arith.mulf %29, %35 : vector<2x256xf32>
      %37 = vector.broadcast %25 : vector<1x256xf32> to vector<2x256xf32>
      %38 = arith.mulf %36, %37 : vector<2x256xf32>
      %39 = vector.broadcast %26 : vector<1x256xf32> to vector<2x256xf32>
      %40 = arith.addf %38, %39 : vector<2x256xf32>
      %cst_33 = arith.constant 0.000000e+00 : f32
      %41 = vector.broadcast %cst_33 : f32 to vector<2x256xf32>
      %42 = arith.maximumf %40, %41 : vector<2x256xf32>
      %c0_34 = arith.constant 0 : index
      %c0_35 = arith.constant 0 : index
      %43 = vector.load %arg12[%c0_34, %c0_35] : memref<256x128xf32, #tpu.memory_space<vmem>>, vector<256x128xf32>
      %cst_36 = arith.constant dense<0.000000e+00> : vector<2x128xf32>
      %44 = tpu.matmul %42, %43, %cst_36 {dimension_numbers = #tpu.dot_dimension_numbers<[1], [0], [0], [1], [0, 0, 1, 1], [], []>} : vector<2x256xf32>, vector<256x128xf32>, vector<2x128xf32> -> vector<2x128xf32>
      %c0_37 = arith.constant 0 : index
      %c0_38 = arith.constant 0 : index
      %45 = vector.load %arg13[%c0_37, %c0_38] : memref<1x128xf32, #tpu.memory_space<vmem>>, vector<1x128xf32>
      %46 = vector.broadcast %45 : vector<1x128xf32> to vector<2x128xf32>
      %47 = arith.addf %44, %46 : vector<2x128xf32>
      %c0_39 = arith.constant 0 : index
      %c0_40 = arith.constant 0 : index
      %48 = vector.load %arg16[%c0_39, %c0_40] : memref<128x16xf32, #tpu.memory_space<vmem>>, vector<128x16xf32>
      %c0_41 = arith.constant 0 : index
      %c0_42 = arith.constant 0 : index
      %49 = vector.load %arg17[%c0_41, %c0_42] : memref<16x128xf32, #tpu.memory_space<vmem>>, vector<16x128xf32>
      %c0_43 = arith.constant 0 : index
      %c0_44 = arith.constant 0 : index
      %50 = vector.load %arg14[%c0_43, %c0_44] : memref<1x128xf32, #tpu.memory_space<vmem>>, vector<1x128xf32>
      %c0_45 = arith.constant 0 : index
      %c0_46 = arith.constant 0 : index
      %51 = vector.load %arg15[%c0_45, %c0_46] : memref<1x128xf32, #tpu.memory_space<vmem>>, vector<1x128xf32>
      %cst_47 = arith.constant dense<0.000000e+00> : vector<2x16xf32>
      %52 = tpu.matmul %47, %48, %cst_47 {dimension_numbers = #tpu.dot_dimension_numbers<[1], [0], [0], [1], [0, 0, 1, 1], [], []>} : vector<2x128xf32>, vector<128x16xf32>, vector<2x16xf32> -> vector<2x16xf32>
      %cst_48 = arith.constant dense<0.000000e+00> : vector<2x128xf32>
      %53 = tpu.matmul %52, %49, %cst_48 {dimension_numbers = #tpu.dot_dimension_numbers<[1], [0], [0], [1], [0, 0, 1, 1], [], []>} : vector<2x16xf32>, vector<16x128xf32>, vector<2x128xf32> -> vector<2x128xf32>
      %54 = arith.subf %47, %53 : vector<2x128xf32>
      %55 = arith.mulf %54, %54 : vector<2x128xf32>
      %cst_49 = arith.constant dense<0.000000e+00> : vector<2x16xf32>
      %56 = tpu.matmul %55, %48, %cst_49 {dimension_numbers = #tpu.dot_dimension_numbers<[1], [0], [0], [1], [0, 0, 1, 1], [], []>} : vector<2x128xf32>, vector<128x16xf32>, vector<2x16xf32> -> vector<2x16xf32>
      %cst_50 = arith.constant 9.99999974E-6 : f32
      %57 = vector.broadcast %cst_50 : f32 to vector<2x16xf32>
      %58 = arith.addf %56, %57 : vector<2x16xf32>
      %59 = math.rsqrt %58 : vector<2x16xf32>
      %cst_51 = arith.constant dense<0.000000e+00> : vector<2x128xf32>
      %60 = tpu.matmul %59, %49, %cst_51 {dimension_numbers = #tpu.dot_dimension_numbers<[1], [0], [0], [1], [0, 0, 1, 1], [], []>} : vector<2x16xf32>, vector<16x128xf32>, vector<2x128xf32> -> vector<2x128xf32>
      %61 = arith.mulf %54, %60 : vector<2x128xf32>
      %62 = vector.broadcast %50 : vector<1x128xf32> to vector<2x128xf32>
      %63 = arith.mulf %61, %62 : vector<2x128xf32>
      %64 = vector.broadcast %51 : vector<1x128xf32> to vector<2x128xf32>
      %65 = arith.addf %63, %64 : vector<2x128xf32>
      %cst_52 = arith.constant 0.000000e+00 : f32
      %66 = vector.broadcast %cst_52 : f32 to vector<2x128xf32>
      %67 = arith.maximumf %65, %66 : vector<2x128xf32>
      %c0_53 = arith.constant 0 : index
      %c0_54 = arith.constant 0 : index
      %68 = vector.load %arg18[%c0_53, %c0_54] : memref<128x128xf32, #tpu.memory_space<vmem>>, vector<128x128xf32>
      %cst_55 = arith.constant dense<0.000000e+00> : vector<2x128xf32>
      %69 = tpu.matmul %67, %68, %cst_55 {dimension_numbers = #tpu.dot_dimension_numbers<[1], [0], [0], [1], [0, 0, 1, 1], [], []>} : vector<2x128xf32>, vector<128x128xf32>, vector<2x128xf32> -> vector<2x128xf32>
      %c0_56 = arith.constant 0 : index
      %c0_57 = arith.constant 0 : index
      %70 = vector.load %arg19[%c0_56, %c0_57] : memref<1x128xf32, #tpu.memory_space<vmem>>, vector<1x128xf32>
      %71 = vector.broadcast %70 : vector<1x128xf32> to vector<2x128xf32>
      %72 = arith.addf %69, %71 : vector<2x128xf32>
      %c0_58 = arith.constant 0 : index
      %c0_59 = arith.constant 0 : index
      %73 = vector.load %arg20[%c0_58, %c0_59] : memref<2x128xf32, #tpu.memory_space<vmem>>, vector<2x128xf32>
      tpu.vector_store %arg20[%c0_58, %c0_59], %72 {strides = array<i32>} : memref<2x128xf32, #tpu.memory_space<vmem>>, vector<2x128xf32>,
    } else {
    }
    return
  }
  func.func @transform_0(%arg0: i32, %arg1: i32) -> (i32, i32) {
    %c0_i32 = arith.constant 0 : i32
    return %arg0, %arg1 : i32, i32
  }
  func.func @transform_1(%arg0: i32, %arg1: i32) -> (i32, i32) {
    %c0_i32 = arith.constant 0 : i32
    %c0_i32_0 = arith.constant 0 : i32
    %c0_i32_1 = arith.constant 0 : i32
    return %c0_i32, %c0_i32_0 : i32, i32
  }
  func.func @transform_2(%arg0: i32, %arg1: i32) -> (i32, i32) {
    %c0_i32 = arith.constant 0 : i32
    %c0_i32_0 = arith.constant 0 : i32
    %c0_i32_1 = arith.constant 0 : i32
    return %c0_i32, %c0_i32_0 : i32, i32
  }
  func.func @transform_3(%arg0: i32, %arg1: i32) -> (i32, i32) {
    %c0_i32 = arith.constant 0 : i32
    %c0_i32_0 = arith.constant 0 : i32
    %c0_i32_1 = arith.constant 0 : i32
    return %c0_i32, %c0_i32_0 : i32, i32
  }
  func.func @transform_4(%arg0: i32, %arg1: i32) -> (i32, i32) {
    %c0_i32 = arith.constant 0 : i32
    %c0_i32_0 = arith.constant 0 : i32
    %c0_i32_1 = arith.constant 0 : i32
    return %c0_i32, %c0_i32_0 : i32, i32
  }
  func.func @transform_5(%arg0: i32, %arg1: i32) -> (i32, i32) {
    %c0_i32 = arith.constant 0 : i32
    %c0_i32_0 = arith.constant 0 : i32
    %c0_i32_1 = arith.constant 0 : i32
    return %c0_i32, %c0_i32_0 : i32, i32
  }
  func.func @transform_6(%arg0: i32, %arg1: i32) -> (i32, i32) {
    %c0_i32 = arith.constant 0 : i32
    %c0_i32_0 = arith.constant 0 : i32
    %c0_i32_1 = arith.constant 0 : i32
    return %c0_i32, %c0_i32_0 : i32, i32
  }
  func.func @transform_7(%arg0: i32, %arg1: i32) -> (i32, i32) {
    %c0_i32 = arith.constant 0 : i32
    %c0_i32_0 = arith.constant 0 : i32
    %c0_i32_1 = arith.constant 0 : i32
    return %c0_i32, %c0_i32_0 : i32, i32
  }
  func.func @transform_8(%arg0: i32, %arg1: i32) -> (i32, i32) {
    %c0_i32 = arith.constant 0 : i32
    %c0_i32_0 = arith.constant 0 : i32
    %c0_i32_1 = arith.constant 0 : i32
    return %c0_i32, %c0_i32_0 : i32, i32
  }
  func.func @transform_9(%arg0: i32, %arg1: i32) -> (i32, i32) {
    %c0_i32 = arith.constant 0 : i32
    %c0_i32_0 = arith.constant 0 : i32
    %c0_i32_1 = arith.constant 0 : i32
    return %c0_i32, %c0_i32_0 : i32, i32
  }
  func.func @transform_10(%arg0: i32, %arg1: i32) -> (i32, i32) {
    %c0_i32 = arith.constant 0 : i32
    %c0_i32_0 = arith.constant 0 : i32
    %c0_i32_1 = arith.constant 0 : i32
    return %c0_i32, %c0_i32_0 : i32, i32
  }
  func.func @transform_11(%arg0: i32, %arg1: i32) -> (i32, i32) {
    %c0_i32 = arith.constant 0 : i32
    %c0_i32_0 = arith.constant 0 : i32
    %c0_i32_1 = arith.constant 0 : i32
    return %c0_i32, %c0_i32_0 : i32, i32
  }
  func.func @transform_12(%arg0: i32, %arg1: i32) -> (i32, i32) {
    %c0_i32 = arith.constant 0 : i32
    %c0_i32_0 = arith.constant 0 : i32
    %c0_i32_1 = arith.constant 0 : i32
    return %c0_i32, %c0_i32_0 : i32, i32
  }
  func.func @transform_13(%arg0: i32, %arg1: i32) -> (i32, i32) {
    %c0_i32 = arith.constant 0 : i32
    %c0_i32_0 = arith.constant 0 : i32
    %c0_i32_1 = arith.constant 0 : i32
    return %c0_i32, %c0_i32_0 : i32, i32
  }
  func.func @transform_14(%arg0: i32, %arg1: i32) -> (i32, i32) {
    %c0_i32 = arith.constant 0 : i32
    %c0_i32_0 = arith.constant 0 : i32
    %c0_i32_1 = arith.constant 0 : i32
    return %c0_i32, %c0_i32_0 : i32, i32
  }
  func.func @transform_15(%arg0: i32, %arg1: i32) -> (i32, i32) {
    %c0_i32 = arith.constant 0 : i32
    %c0_i32_0 = arith.constant 0 : i32
    %c0_i32_1 = arith.constant 0 : i32
    return %c0_i32, %c0_i32_0 : i32, i32
  }
  func.func @transform_16(%arg0: i32, %arg1: i32) -> (i32, i32) {
    %c0_i32 = arith.constant 0 : i32
    %c0_i32_0 = arith.constant 0 : i32
    %c0_i32_1 = arith.constant 0 : i32
    return %c0_i32, %c0_i32_0 : i32, i32
  }
  func.func @transform_17(%arg0: i32, %arg1: i32) -> (i32, i32) {
    %c0_i32 = arith.constant 0 : i32
    %c0_i32_0 = arith.constant 0 : i32
    %c0_i32_1 = arith.constant 0 : i32
    return %c0_i32, %c0_i32_0 : i32, i32
  }
  func.func @transform_18(%arg0: i32, %arg1: i32) -> (i32, i32) {
    %c0_i32 = arith.constant 0 : i32
    %c0_i32_0 = arith.constant 0 : i32
    return %arg0, %c0_i32 : i32, i32
  }
}

</mosaic_0001>

<llo_original>
// kernel: classification_head.1
$region0: #{classification_head.1}
  #allocation0 [shape = 'u32[]', space=smem, size = 0x4, offset = 0x4, fixed_abs, tag = 'smem constant byte address 0x4 - core index']
  #allocation1 [shape = 'u32[144,128]{1,0:T(1,128)}', space=vmem, size = 0x12000, scoped, tag = 'internal scratch']
  #allocation2 [shape = 'f32[32,128]{1,0:T(8,128)}', space=vmem, size = 0x4000, scoped, tag = 'scratch operand']
  %s0 = inlined_call_operand.vmem [shape: f32[32,128], index: 0, kind: input, shape index: {}]
  %s1 = inlined_call_operand.vmem [shape: f32[8,128], index: 1, kind: input, shape index: {}]
  %s2 = inlined_call_operand.vmem [shape: f32[2,32], index: 2, kind: input, shape index: {}]
  %s3 = inlined_call_operand.vmem [shape: f32[32,4], index: 3, kind: input, shape index: {}]
  %s4 = inlined_call_operand.vmem [shape: f32[4,256], index: 4, kind: input, shape index: {}]
  %s5 = inlined_call_operand.vmem [shape: f32[1,256], index: 5, kind: input, shape index: {}]
  %s6 = inlined_call_operand.vmem [shape: f32[1,256], index: 6, kind: input, shape index: {}]
  %s7 = inlined_call_operand.vmem [shape: f32[1,256], index: 7, kind: input, shape index: {}]
  %s8 = inlined_call_operand.vmem [shape: f32[256,32], index: 8, kind: input, shape index: {}]
  %s9 = inlined_call_operand.vmem [shape: f32[32,256], index: 9, kind: input, shape index: {}]
  %s10 = inlined_call_operand.vmem [shape: f32[256,128], index: 10, kind: input, shape index: {}]
  %s11 = inlined_call_operand.vmem [shape: f32[1,128], index: 11, kind: input, shape index: {}]
  %s12 = inlined_call_operand.vmem [shape: f32[1,128], index: 12, kind: input, shape index: {}]
  %s13 = inlined_call_operand.vmem [shape: f32[1,128], index: 13, kind: input, shape index: {}]
  %s14 = inlined_call_operand.vmem [shape: f32[128,16], index: 14, kind: input, shape index: {}]
  %s15 = inlined_call_operand.vmem [shape: f32[16,128], index: 15, kind: input, shape index: {}]
  %s16 = inlined_call_operand.vmem [shape: f32[128,128], index: 16, kind: input, shape index: {}]
  %s17 = inlined_call_operand.vmem [shape: f32[1,128], index: 17, kind: input, shape index: {}]
  %s18 = inlined_call_operand.hbm [shape: f32[2,128], index: 18, kind: output, shape index: {}]
  %s19 = sld [smem:[#allocation0]]
  $region90: #{classification_head.1} parent=0
    _
  %s21 = ssub.s32 1, %s19
  %s22 = scalar_select 0, %s21, %s19
  $region1: #{classification_head.1} parent=0
    #allocation3 [shape = 'u8[1024]{0}', space=vmem, size = 0x400, scoped, tag = 'output window, operand 0, single buffered']
    #allocation4 [shape = 's32[1]{0}', space=sflag, size = 0x4, scoped, tag = 'scoped memory for classification_head.1']
    %23 = vsyncpa [#allocation4], 0
    // Predicated region
    $region2: #{classification_head.1} parent=1 // pred_check
      _
    $region3: #{classification_head.1} parent=1 // pred_check_branch
      %25 = sbr.rel (0) target = $region5
    $region4: #{classification_head.1} parent=1 // pred_region
      _
    $region5: #{classification_head.1} parent=1 // pred_fallthru
      _
    // Predicated region
    $region6: #{classification_head.1} parent=1 // pred_check
      _
    $region7: #{classification_head.1} parent=1 // pred_check_branch
      %27 = sbr.rel (0) target = $region9
    $region8: #{classification_head.1} parent=1 // pred_region
      _
    $region9: #{classification_head.1} parent=1 // pred_fallthru
      _
    // Predicated region
    $region10: #{classification_head.1} parent=1 // pred_check
      _
    $region11: #{classification_head.1} parent=1 // pred_check_branch
      %29 = sbr.rel (0) target = $region13
    $region12: #{classification_head.1} parent=1 // pred_region
      _
    $region13: #{classification_head.1} parent=1 // pred_fallthru
      _
    // Predicated region
    $region14: #{classification_head.1} parent=1 // pred_check
      _
    $region15: #{classification_head.1} parent=1 // pred_check_branch
      %31 = sbr.rel (0) target = $region17
    $region16: #{classification_head.1} parent=1 // pred_region
      _
    $region17: #{classification_head.1} parent=1 // pred_fallthru
      _
    // Predicated region
    $region18: #{classification_head.1} parent=1 // pred_check
      _
    $region19: #{classification_head.1} parent=1 // pred_check_branch
      %33 = sbr.rel (0) target = $region21
    $region20: #{classification_head.1} parent=1 // pred_region
      _
    $region21: #{classification_head.1} parent=1 // pred_fallthru
      _
    // Predicated region
    $region22: #{classification_head.1} parent=1 // pred_check
      _
    $region23: #{classification_head.1} parent=1 // pred_check_branch
      %35 = sbr.rel (0) target = $region25
    $region24: #{classification_head.1} parent=1 // pred_region
      _
    $region25: #{classification_head.1} parent=1 // pred_fallthru
      _
    // Predicated region
    $region26: #{classification_head.1} parent=1 // pred_check
      _
    $region27: #{classification_head.1} parent=1 // pred_check_branch
      %37 = sbr.rel (0) target = $region29
    $region28: #{classification_head.1} parent=1 // pred_region
      _
    $region29: #{classification_head.1} parent=1 // pred_fallthru
      _
    // Predicated region
    $region30: #{classification_head.1} parent=1 // pred_check
      _
    $region31: #{classification_head.1} parent=1 // pred_check_branch
      %39 = sbr.rel (0) target = $region33
    $region32: #{classification_head.1} parent=1 // pred_region
      _
    $region33: #{classification_head.1} parent=1 // pred_fallthru
      _
    // Predicated region
    $region34: #{classification_head.1} parent=1 // pred_check
      _
    $region35: #{classification_head.1} parent=1 // pred_check_branch
      %41 = sbr.rel (0) target = $region37
    $region36: #{classification_head.1} parent=1 // pred_region
      _
    $region37: #{classification_head.1} parent=1 // pred_fallthru
      _
    // Predicated region
    $region38: #{classification_head.1} parent=1 // pred_check
      _
    $region39: #{classification_head.1} parent=1 // pred_check_branch
      %43 = sbr.rel (0) target = $region41
    $region40: #{classification_head.1} parent=1 // pred_region
      _
    $region41: #{classification_head.1} parent=1 // pred_fallthru
      _
    // Predicated region
    $region42: #{classification_head.1} parent=1 // pred_check
      _
    $region43: #{classification_head.1} parent=1 // pred_check_branch
      %45 = sbr.rel (0) target = $region45
    $region44: #{classification_head.1} parent=1 // pred_region
      _
    $region45: #{classification_head.1} parent=1 // pred_fallthru
      _
    // Predicated region
    $region46: #{classification_head.1} parent=1 // pred_check
      _
    $region47: #{classification_head.1} parent=1 // pred_check_branch
      %47 = sbr.rel (0) target = $region49
    $region48: #{classification_head.1} parent=1 // pred_region
      _
    $region49: #{classification_head.1} parent=1 // pred_fallthru
      _
    // Predicated region
    $region50: #{classification_head.1} parent=1 // pred_check
      _
    $region51: #{classification_head.1} parent=1 // pred_check_branch
      %49 = sbr.rel (0) target = $region53
    $region52: #{classification_head.1} parent=1 // pred_region
      _
    $region53: #{classification_head.1} parent=1 // pred_fallthru
      _
    // Predicated region
    $region54: #{classification_head.1} parent=1 // pred_check
      _
    $region55: #{classification_head.1} parent=1 // pred_check_branch
      %51 = sbr.rel (0) target = $region57
    $region56: #{classification_head.1} parent=1 // pred_region
      _
    $region57: #{classification_head.1} parent=1 // pred_fallthru
      _
    // Predicated region
    $region58: #{classification_head.1} parent=1 // pred_check
      _
    $region59: #{classification_head.1} parent=1 // pred_check_branch
      %53 = sbr.rel (0) target = $region61
    $region60: #{classification_head.1} parent=1 // pred_region
      _
    $region61: #{classification_head.1} parent=1 // pred_fallthru
      _
    // Predicated region
    $region62: #{classification_head.1} parent=1 // pred_check
      _
    $region63: #{classification_head.1} parent=1 // pred_check_branch
      %55 = sbr.rel (0) target = $region65
    $region64: #{classification_head.1} parent=1 // pred_region
      _
    $region65: #{classification_head.1} parent=1 // pred_fallthru
      _
    // Predicated region
    $region66: #{classification_head.1} parent=1 // pred_check
      _
    $region67: #{classification_head.1} parent=1 // pred_check_branch
      %57 = sbr.rel (0) target = $region69
    $region68: #{classification_head.1} parent=1 // pred_region
      _
    $region69: #{classification_head.1} parent=1 // pred_fallthru
      _
    // Predicated region
    $region70: #{classification_head.1} parent=1 // pred_check
      _
    $region71: #{classification_head.1} parent=1 // pred_check_branch
      %59 = sbr.rel (0) target = $region73
    $region72: #{classification_head.1} parent=1 // pred_region
      _
    $region73: #{classification_head.1} parent=1 // pred_fallthru
      _
    %p60 = scmp.eq.s32.totalorder 0, 0
    // Predicated region
    $region74: #{classification_head.1} parent=1 // pred_check
      %p61 = pneg %p60
    $region75: #{classification_head.1} parent=1 // pred_check_branch
      %63 = sbr.rel (%p61) target = $region77
    $region76: #{classification_head.1} parent=1 // pred_region
      %64 = vst [vmem:[#allocation2] sm:$0xff] 0.0
      %65 = vst [vmem:[#allocation2 + $0x8] sm:$0xff] 0.0
      %66 = vst [vmem:[#allocation2 + $0x10] sm:$0xff] 0.0
      %67 = vst [vmem:[#allocation2 + $0x18] sm:$0xff] 0.0
    $region77: #{classification_head.1} parent=1 // pred_fallthru
      _
    %v68 = vld [vmem:[%s0] sm:$0xff]
    %v69 = vld [vmem:[%s0 + $0x8] sm:$0xff]
    %v70 = vld [vmem:[%s0 + $0x10] sm:$0xff]
    %v71 = vld [vmem:[%s0 + $0x18] sm:$0xff]
    %v72 = vld [vmem:[#allocation2] sm:$0xff]
    %v73 = vld [vmem:[#allocation2 + $0x8] sm:$0xff]
    %v74 = vld [vmem:[#allocation2 + $0x10] sm:$0xff]
    %v75 = vld [vmem:[#allocation2 + $0x18] sm:$0xff]
    %v76 = vadd.f32 %v72, %v68
    %v77 = vadd.f32 %v73, %v69
    %v78 = vadd.f32 %v74, %v70
    %v79 = vadd.f32 %v75, %v71
    %80 = vst [vmem:[#allocation2] sm:$0xff] %v76
    %81 = vst [vmem:[#allocation2 + $0x8] sm:$0xff] %v77
    %82 = vst [vmem:[#allocation2 + $0x10] sm:$0xff] %v78
    %83 = vst [vmem:[#allocation2 + $0x18] sm:$0xff] %v79
    // Predicated region
    $region78: #{classification_head.1} parent=1 // pred_check
      %p84 = pneg %p60
    $region79: #{classification_head.1} parent=1 // pred_check_branch
      %86 = sbr.rel (%p84) target = $region81
    $region80: #{classification_head.1} parent=1 // pred_region
      %v87 = vld [vmem:[#allocation2] sm:$0xff]
      %v88 = vld [vmem:[#allocation2 + $0x8] sm:$0xff]
      %v89 = vld [vmem:[#allocation2 + $0x10] sm:$0xff]
      %v90 = vld [vmem:[#allocation2 + $0x18] sm:$0xff]
      %91 = vadd.xlane.f32.xlu0 %v87
      %v92 = vpop.xlane.xlu0 %91
      %93 = vadd.xlane.f32.xlu0 %v88
      %v94 = vpop.xlane.xlu0 %93
      %95 = vadd.xlane.f32.xlu0 %v89
      %v96 = vpop.xlane.xlu0 %95
      %97 = vadd.xlane.f32.xlu0 %v90
      %v98 = vpop.xlane.xlu0 %97
      %v99 = vld [vmem:[%s2] sm:$0x3]
      %v100 = vld [vmem:[%s3] sm:$0xff]
      %v101 = vld [vmem:[%s3 + $0x8] sm:$0xff]
      %v102 = vld [vmem:[%s3 + $0x10] sm:$0xff]
      %v103 = vld [vmem:[%s3 + $0x18] sm:$0xff]
      %v104 = vmul.f32 %v92, %v100
      %v105 = vmul.f32 %v94, %v101
      %v106 = vmul.f32 %v96, %v102
      %v107 = vmul.f32 %v98, %v103
      %vm108 = vcmask 261120
      %v110 = vsel %vm108, %v99, 0
      %112 = vmatprep.subr.mxu0 0.0
      %113 = vmatpush1.msra.mxu0 %v104
      %114 = vmatprep.subr.mxu0 0.0
      %115 = vmatpush1.msra.mxu0 %v105
      %116 = vmatprep.subr.mxu0 0.0
      %117 = vmatpush1.msra.mxu0 %v106
      %118 = vmatprep.subr.mxu0 0.0
      %119 = vmatpush1.msra.mxu0 %v107
      %120 = vmatprep.subr.mxu0 0.0
      %121 = vmatpush1.msra.mxu0 0.0
      %122 = vmatprep.subr.mxu0 0.0
      %123 = vmatpush1.msra.mxu0 0.0
      %124 = vmatprep.subr.mxu0 0.0
      %125 = vmatpush1.msra.mxu0 0.0
      %126 = vmatprep.subr.mxu0 0.0
      %127 = vmatpush1.msra.mxu0 0.0
      %128 = vmatprep.subr.mxu0 0.0
      %129 = vmatpush1.msra.mxu0 0.0
      %130 = vmatprep.subr.mxu0 0.0
      %131 = vmatpush1.msra.mxu0 0.0
      %132 = vmatprep.subr.mxu0 0.0
      %133 = vmatpush1.msra.mxu0 0.0
      %134 = vmatprep.subr.mxu0 0.0
      %135 = vmatpush1.msra.mxu0 0.0
      %136 = vmatprep.subr.mxu0 0.0
      %137 = vmatpush1.msra.mxu0 0.0
      %138 = vmatprep.subr.mxu0 0.0
      %139 = vmatpush1.msra.mxu0 0.0
      %140 = vmatprep.subr.mxu0 0.0
      %141 = vmatpush1.msra.mxu0 0.0
      %142 = vmatprep.subr.mxu0 0.0
      %143 = vmatpush1.msra.mxu0 0.0
      %144 = vmatprep.subr.mxu0 0.0
      %145 = vmatpush1.msra.mxu0 0.0
      %146 = vmatprep.subr.mxu0 0.0
      %147 = vmatpush1.msra.mxu0 0.0
      %148 = vmatprep.subr.mxu0 0.0
      %149 = vmatpush1.msra.mxu0 0.0
      %150 = vmatprep.subr.mxu0 0.0
      %151 = vmatpush1.msra.mxu0 0.0
      %152 = vmatprep.subr.mxu0 0.0
      %153 = vmatpush1.msra.mxu0 0.0
      %154 = vmatprep.subr.mxu0 0.0
      %155 = vmatpush1.msra.mxu0 0.0
      %156 = vmatprep.subr.mxu0 0.0
      %157 = vmatpush1.msra.mxu0 0.0
      %158 = vmatprep.subr.mxu0 0.0
      %159 = vmatpush1.msra.mxu0 0.0
      %160 = vmatprep.subr.mxu0 0.0
      %161 = vmatpush1.msra.mxu0 0.0
      %162 = vmatprep.subr.mxu0 0.0
      %163 = vmatpush1.msra.mxu0 0.0
      %164 = vmatprep.subr.mxu0 0.0
      %165 = vmatpush1.msra.mxu0 0.0
      %166 = vmatprep.subr.mxu0 0.0
      %167 = vmatpush1.msra.mxu0 0.0
      %168 = vmatprep.subr.mxu0 0.0
      %169 = vmatpush1.msra.mxu0 0.0
      %170 = vmatprep.subr.mxu0 0.0
      %171 = vmatpush1.msra.mxu0 0.0
      %172 = vmatprep.subr.mxu0 0.0
      %173 = vmatpush1.msra.mxu0 0.0
      %174 = vmatprep.subr.mxu0 0.0
      %175 = vmatpush1.msra.mxu0 0.0
      %176 = vmatprep.mubr.f32.mxu0 0.0
      %177 = vmatmul.mubr.f32.gmra.mrb[0].mxu0 %v110
      %v178 = vpop.f32.mrb[0].mxu0
      %v179 = vadd.f32 0.0, %v178
      %v180 = vpop.f32.mrb[0].mxu0
      %181 = vdwg.mxu0
      %v182 = vld [vmem:[%s4] sm:$0xff]
      %v183 = vld [vmem:[%s5] sm:$0x3]
      %v185 = vlaneseq
      %v186 = vshrl.u32 %v185, 7
      %v187 = vsub.s32 0, %v186
      %v188 = vrot.slane %v183, %v187
      %v189 = vlaneseq
      %v190 = vshrl.u32 %v189, 7
      %v191 = vsub.s32 1, %v190
      %v192 = vrot.slane %v183, %v191
      %v196 = vcombine.high %v182, %v182
      %vm197 = vcmask 31744
      %v199 = vsel %vm197, %v179, 0
      %vm201 = vcmask 1043456
      %v202 = vsel %vm201, %v182, 0
      %v204 = vsel %vm201, %v196, 0
      %206 = vmatprep.subr.mxu0 %v204
      %207 = vmatpush1.msra.mxu0 %v202
      %208 = vmatprep.subr.mxu0 0.0
      %209 = vmatpush1.msra.mxu0 0.0
      %210 = vmatprep.subr.mxu0 0.0
      %211 = vmatpush1.msra.mxu0 0.0
      %212 = vmatprep.subr.mxu0 0.0
      %213 = vmatpush1.msra.mxu0 0.0
      %214 = vmatprep.subr.mxu0 0.0
      %215 = vmatpush1.msra.mxu0 0.0
      %216 = vmatprep.subr.mxu0 0.0
      %217 = vmatpush1.msra.mxu0 0.0
      %218 = vmatprep.subr.mxu0 0.0
      %219 = vmatpush1.msra.mxu0 0.0
      %220 = vmatprep.subr.mxu0 0.0
      %221 = vmatpush1.msra.mxu0 0.0
      %222 = vmatprep.subr.mxu0 0.0
      %223 = vmatpush1.msra.mxu0 0.0
      %224 = vmatprep.subr.mxu0 0.0
      %225 = vmatpush1.msra.mxu0 0.0
      %226 = vmatprep.subr.mxu0 0.0
      %227 = vmatpush1.msra.mxu0 0.0
      %228 = vmatprep.subr.mxu0 0.0
      %229 = vmatpush1.msra.mxu0 0.0
      %230 = vmatprep.subr.mxu0 0.0
      %231 = vmatpush1.msra.mxu0 0.0
      %232 = vmatprep.subr.mxu0 0.0
      %233 = vmatpush1.msra.mxu0 0.0
      %234 = vmatprep.subr.mxu0 0.0
      %235 = vmatpush1.msra.mxu0 0.0
      %236 = vmatprep.subr.mxu0 0.0
      %237 = vmatpush1.msra.mxu0 0.0
      %238 = vmatprep.subr.mxu0 0.0
      %239 = vmatpush1.msra.mxu0 0.0
      %240 = vmatprep.subr.mxu0 0.0
      %241 = vmatpush1.msra.mxu0 0.0
      %242 = vmatprep.subr.mxu0 0.0
      %243 = vmatpush1.msra.mxu0 0.0
      %244 = vmatprep.subr.mxu0 0.0
      %245 = vmatpush1.msra.mxu0 0.0
      %246 = vmatprep.subr.mxu0 0.0
      %247 = vmatpush1.msra.mxu0 0.0
      %248 = vmatprep.subr.mxu0 0.0
      %249 = vmatpush1.msra.mxu0 0.0
      %250 = vmatprep.subr.mxu0 0.0
      %251 = vmatpush1.msra.mxu0 0.0
      %252 = vmatprep.subr.mxu0 0.0
      %253 = vmatpush1.msra.mxu0 0.0
      %254 = vmatprep.subr.mxu0 0.0
      %255 = vmatpush1.msra.mxu0 0.0
      %256 = vmatprep.subr.mxu0 0.0
      %257 = vmatpush1.msra.mxu0 0.0
      %258 = vmatprep.subr.mxu0 0.0
      %259 = vmatpush1.msra.mxu0 0.0
      %260 = vmatprep.subr.mxu0 0.0
      %261 = vmatpush1.msra.mxu0 0.0
      %262 = vmatprep.subr.mxu0 0.0
      %263 = vmatpush1.msra.mxu0 0.0
      %264 = vmatprep.subr.mxu0 0.0
      %265 = vmatpush1.msra.mxu0 0.0
      %266 = vmatprep.subr.mxu0 0.0
      %267 = vmatpush1.msra.mxu0 0.0
      %268 = vmatprep.subr.mxu0 0.0
      %269 = vmatpush1.msra.mxu0 0.0
      %270 = vmatprep.mubr.f32.mxu0 0.0
      %271 = vmatmul.mubr.f32.gmra.mrb[0].mxu0 %v199
      %v272 = vpop.f32.mrb[0].mxu0
      %v273 = vadd.f32 %v188, %v272
      %v274 = vpop.f32.mrb[0].mxu0
      %v275 = vadd.f32 %v192, %v274
      %276 = vdwg.mxu0
      %v277 = vld [vmem:[%s8] sm:$0xff]
      %v278 = vld [vmem:[%s8 + $0x8] sm:$0xff]
      %v279 = vld [vmem:[%s8 + $0x10] sm:$0xff]
      %v280 = vld [vmem:[%s8 + $0x18] sm:$0xff]
      %v281 = vld [vmem:[%s8 + $0x20] sm:$0xff]
      %v282 = vld [vmem:[%s8 + $0x28] sm:$0xff]
      %v283 = vld [vmem:[%s8 + $0x30] sm:$0xff]
      %v284 = vld [vmem:[%s8 + $0x38] sm:$0xff]
      %v285 = vld [vmem:[%s8 + $0x40] sm:$0xff]
      %v286 = vld [vmem:[%s8 + $0x48] sm:$0xff]
      %v287 = vld [vmem:[%s8 + $0x50] sm:$0xff]
      %v288 = vld [vmem:[%s8 + $0x58] sm:$0xff]
      %v289 = vld [vmem:[%s8 + $0x60] sm:$0xff]
      %v290 = vld [vmem:[%s8 + $0x68] sm:$0xff]
      %v291 = vld [vmem:[%s8 + $0x70] sm:$0xff]
      %v292 = vld [vmem:[%s8 + $0x78] sm:$0xff]
      %v293 = vld [vmem:[%s8 + $0x80] sm:$0xff]
      %v294 = vld [vmem:[%s8 + $0x88] sm:$0xff]
      %v295 = vld [vmem:[%s8 + $0x90] sm:$0xff]
      %v296 = vld [vmem:[%s8 + $0x98] sm:$0xff]
      %v297 = vld [vmem:[%s8 + $0xa0] sm:$0xff]
      %v298 = vld [vmem:[%s8 + $0xa8] sm:$0xff]
      %v299 = vld [vmem:[%s8 + $0xb0] sm:$0xff]
      %v300 = vld [vmem:[%s8 + $0xb8] sm:$0xff]
      %v301 = vld [vmem:[%s8 + $0xc0] sm:$0xff]
      %v302 = vld [vmem:[%s8 + $0xc8] sm:$0xff]
      %v303 = vld [vmem:[%s8 + $0xd0] sm:$0xff]
      %v304 = vld [vmem:[%s8 + $0xd8] sm:$0xff]
      %v305 = vld [vmem:[%s8 + $0xe0] sm:$0xff]
      %v306 = vld [vmem:[%s8 + $0xe8] sm:$0xff]
      %v307 = vld [vmem:[%s8 + $0xf0] sm:$0xff]
      %v308 = vld [vmem:[%s8 + $0xf8] sm:$0xff]
      %v309 = vld [vmem:[%s9] sm:$0xff]
      %v310 = vld [vmem:[%s9 + $0x8] sm:$0xff]
      %v311 = vld [vmem:[%s9 + $0x10] sm:$0xff]
      %v312 = vld [vmem:[%s9 + $0x18] sm:$0xff]
      %v313 = vld [vmem:[%s9 + $0x20] sm:$0xff]
      %v314 = vld [vmem:[%s9 + $0x28] sm:$0xff]
      %v315 = vld [vmem:[%s9 + $0x30] sm:$0xff]
      %v316 = vld [vmem:[%s9 + $0x38] sm:$0xff]
      %v317 = vld [vmem:[%s6] sm:$0x3]
      %v318 = vld [vmem:[%s7] sm:$0x3]
      %319 = vmatprep.subr.mxu0 0.0
      %320 = vmatpush1.msra.mxu0 %v277
      %321 = vmatprep.subr.mxu0 0.0
      %322 = vmatpush1.msra.mxu0 %v278
      %323 = vmatprep.subr.mxu0 0.0
      %324 = vmatpush1.msra.mxu0 %v279
      %325 = vmatprep.subr.mxu0 0.0
      %326 = vmatpush1.msra.mxu0 %v280
      %327 = vmatprep.subr.mxu0 0.0
      %328 = vmatpush1.msra.mxu0 %v281
      %329 = vmatprep.subr.mxu0 0.0
      %330 = vmatpush1.msra.mxu0 %v282
      %331 = vmatprep.subr.mxu0 0.0
      %332 = vmatpush1.msra.mxu0 %v283
      %333 = vmatprep.subr.mxu0 0.0
      %334 = vmatpush1.msra.mxu0 %v284
      %335 = vmatprep.subr.mxu0 0.0
      %336 = vmatpush1.msra.mxu0 %v285
      %337 = vmatprep.subr.mxu0 0.0
      %338 = vmatpush1.msra.mxu0 %v286
      %339 = vmatprep.subr.mxu0 0.0
      %340 = vmatpush1.msra.mxu0 %v287
      %341 = vmatprep.subr.mxu0 0.0
      %342 = vmatpush1.msra.mxu0 %v288
      %343 = vmatprep.subr.mxu0 0.0
      %344 = vmatpush1.msra.mxu0 %v289
      %345 = vmatprep.subr.mxu0 0.0
      %346 = vmatpush1.msra.mxu0 %v290
      %347 = vmatprep.subr.mxu0 0.0
      %348 = vmatpush1.msra.mxu0 %v291
      %349 = vmatprep.subr.mxu0 0.0
      %350 = vmatpush1.msra.mxu0 %v292
      %351 = vmatprep.subr.mxu0 0.0
      %352 = vmatpush1.msra.mxu0 %v293
      %353 = vmatprep.subr.mxu0 0.0
      %354 = vmatpush1.msra.mxu0 %v294
      %355 = vmatprep.subr.mxu0 0.0
      %356 = vmatpush1.msra.mxu0 %v295
      %357 = vmatprep.subr.mxu0 0.0
      %358 = vmatpush1.msra.mxu0 %v296
      %359 = vmatprep.subr.mxu0 0.0
      %360 = vmatpush1.msra.mxu0 %v297
      %361 = vmatprep.subr.mxu0 0.0
      %362 = vmatpush1.msra.mxu0 %v298
      %363 = vmatprep.subr.mxu0 0.0
      %364 = vmatpush1.msra.mxu0 %v299
      %365 = vmatprep.subr.mxu0 0.0
      %366 = vmatpush1.msra.mxu0 %v300
      %367 = vmatprep.subr.mxu0 0.0
      %368 = vmatpush1.msra.mxu0 %v301
      %369 = vmatprep.subr.mxu0 0.0
      %370 = vmatpush1.msra.mxu0 %v302
      %371 = vmatprep.subr.mxu0 0.0
      %372 = vmatpush1.msra.mxu0 %v303
      %373 = vmatprep.subr.mxu0 0.0
      %374 = vmatpush1.msra.mxu0 %v304
      %375 = vmatprep.subr.mxu0 0.0
      %376 = vmatpush1.msra.mxu0 %v305
      %377 = vmatprep.subr.mxu0 0.0
      %378 = vmatpush1.msra.mxu0 %v306
      %379 = vmatprep.subr.mxu0 0.0
      %380 = vmatpush1.msra.mxu0 %v307
      %381 = vmatprep.subr.mxu0 0.0
      %382 = vmatpush1.msra.mxu0 %v308
      %383 = vmatprep.mubr.f32.mxu0 %v275
      %384 = vmatmul.mubr.f32.gmra.mrb[0].mxu0 %v273
      %v385 = vpop.f32.mrb[0].mxu0
      %v386 = vadd.f32 0.0, %v385
      %v387 = vpop.f32.mrb[0].mxu0
      %388 = vdwg.mxu0
      %v390 = vsel %vm108, %v386, 0
      %392 = vmatprep.subr.mxu0 %v310
      %393 = vmatpush1.msra.mxu0 %v309
      %394 = vmatprep.subr.mxu0 %v312
      %395 = vmatpush1.msra.mxu0 %v311
      %396 = vmatprep.subr.mxu0 %v314
      %397 = vmatpush1.msra.mxu0 %v313
      %398 = vmatprep.subr.mxu0 %v316
      %399 = vmatpush1.msra.mxu0 %v315
      %400 = vmatprep.subr.mxu0 0.0
      %401 = vmatpush1.msra.mxu0 0.0
      %402 = vmatprep.subr.mxu0 0.0
      %403 = vmatpush1.msra.mxu0 0.0
      %404 = vmatprep.subr.mxu0 0.0
      %405 = vmatpush1.msra.mxu0 0.0
      %406 = vmatprep.subr.mxu0 0.0
      %407 = vmatpush1.msra.mxu0 0.0
      %408 = vmatprep.subr.mxu0 0.0
      %409 = vmatpush1.msra.mxu0 0.0
      %410 = vmatprep.subr.mxu0 0.0
      %411 = vmatpush1.msra.mxu0 0.0
      %412 = vmatprep.subr.mxu0 0.0
      %413 = vmatpush1.msra.mxu0 0.0
      %414 = vmatprep.subr.mxu0 0.0
      %415 = vmatpush1.msra.mxu0 0.0
      %416 = vmatprep.subr.mxu0 0.0
      %417 = vmatpush1.msra.mxu0 0.0
      %418 = vmatprep.subr.mxu0 0.0
      %419 = vmatpush1.msra.mxu0 0.0
      %420 = vmatprep.subr.mxu0 0.0
      %421 = vmatpush1.msra.mxu0 0.0
      %422 = vmatprep.subr.mxu0 0.0
      %423 = vmatpush1.msra.mxu0 0.0
      %424 = vmatprep.subr.mxu0 0.0
      %425 = vmatpush1.msra.mxu0 0.0
      %426 = vmatprep.subr.mxu0 0.0
      %427 = vmatpush1.msra.mxu0 0.0
      %428 = vmatprep.subr.mxu0 0.0
      %429 = vmatpush1.msra.mxu0 0.0
      %430 = vmatprep.subr.mxu0 0.0
      %431 = vmatpush1.msra.mxu0 0.0
      %432 = vmatprep.subr.mxu0 0.0
      %433 = vmatpush1.msra.mxu0 0.0
      %434 = vmatprep.subr.mxu0 0.0
      %435 = vmatpush1.msra.mxu0 0.0
      %436 = vmatprep.subr.mxu0 0.0
      %437 = vmatpush1.msra.mxu0 0.0
      %438 = vmatprep.subr.mxu0 0.0
      %439 = vmatpush1.msra.mxu0 0.0
      %440 = vmatprep.subr.mxu0 0.0
      %441 = vmatpush1.msra.mxu0 0.0
      %442 = vmatprep.subr.mxu0 0.0
      %443 = vmatpush1.msra.mxu0 0.0
      %444 = vmatprep.subr.mxu0 0.0
      %445 = vmatpush1.msra.mxu0 0.0
      %446 = vmatprep.subr.mxu0 0.0
      %447 = vmatpush1.msra.mxu0 0.0
      %448 = vmatprep.subr.mxu0 0.0
      %449 = vmatpush1.msra.mxu0 0.0
      %450 = vmatprep.subr.mxu0 0.0
      %451 = vmatpush1.msra.mxu0 0.0
      %452 = vmatprep.subr.mxu0 0.0
      %453 = vmatpush1.msra.mxu0 0.0
      %454 = vmatprep.subr.mxu0 0.0
      %455 = vmatpush1.msra.mxu0 0.0
      %456 = vmatprep.mubr.f32.mxu0 0.0
      %457 = vmatmul.mubr.f32.gmra.mrb[0].mxu0 %v390
      %v458 = vpop.f32.mrb[0].mxu0
      %v459 = vadd.f32 0.0, %v458
      %v460 = vpop.f32.mrb[0].mxu0
      %v461 = vadd.f32 0.0, %v460
      %462 = vdwg.mxu0
      %v463 = vsub.f32 %v273, %v459
      %v464 = vsub.f32 %v275, %v461
      %v465 = vmul.f32 %v463, %v463
      %v466 = vmul.f32 %v464, %v464
      %467 = vmatprep.subr.mxu0 0.0
      %468 = vmatpush1.msra.mxu0 %v277
      %469 = vmatprep.subr.mxu0 0.0
      %470 = vmatpush1.msra.mxu0 %v278
      %471 = vmatprep.subr.mxu0 0.0
      %472 = vmatpush1.msra.mxu0 %v279
      %473 = vmatprep.subr.mxu0 0.0
      %474 = vmatpush1.msra.mxu0 %v280
      %475 = vmatprep.subr.mxu0 0.0
      %476 = vmatpush1.msra.mxu0 %v281
      %477 = vmatprep.subr.mxu0 0.0
      %478 = vmatpush1.msra.mxu0 %v282
      %479 = vmatprep.subr.mxu0 0.0
      %480 = vmatpush1.msra.mxu0 %v283
      %481 = vmatprep.subr.mxu0 0.0
      %482 = vmatpush1.msra.mxu0 %v284
      %483 = vmatprep.subr.mxu0 0.0
      %484 = vmatpush1.msra.mxu0 %v285
      %485 = vmatprep.subr.mxu0 0.0
      %486 = vmatpush1.msra.mxu0 %v286
      %487 = vmatprep.subr.mxu0 0.0
      %488 = vmatpush1.msra.mxu0 %v287
      %489 = vmatprep.subr.mxu0 0.0
      %490 = vmatpush1.msra.mxu0 %v288
      %491 = vmatprep.subr.mxu0 0.0
      %492 = vmatpush1.msra.mxu0 %v289
      %493 = vmatprep.subr.mxu0 0.0
      %494 = vmatpush1.msra.mxu0 %v290
      %495 = vmatprep.subr.mxu0 0.0
      %496 = vmatpush1.msra.mxu0 %v291
      %497 = vmatprep.subr.mxu0 0.0
      %498 = vmatpush1.msra.mxu0 %v292
      %499 = vmatprep.subr.mxu0 0.0
      %500 = vmatpush1.msra.mxu0 %v293
      %501 = vmatprep.subr.mxu0 0.0
      %502 = vmatpush1.msra.mxu0 %v294
      %503 = vmatprep.subr.mxu0 0.0
      %504 = vmatpush1.msra.mxu0 %v295
      %505 = vmatprep.subr.mxu0 0.0
      %506 = vmatpush1.msra.mxu0 %v296
      %507 = vmatprep.subr.mxu0 0.0
      %508 = vmatpush1.msra.mxu0 %v297
      %509 = vmatprep.subr.mxu0 0.0
      %510 = vmatpush1.msra.mxu0 %v298
      %511 = vmatprep.subr.mxu0 0.0
      %512 = vmatpush1.msra.mxu0 %v299
      %513 = vmatprep.subr.mxu0 0.0
      %514 = vmatpush1.msra.mxu0 %v300
      %515 = vmatprep.subr.mxu0 0.0
      %516 = vmatpush1.msra.mxu0 %v301
      %517 = vmatprep.subr.mxu0 0.0
      %518 = vmatpush1.msra.mxu0 %v302
      %519 = vmatprep.subr.mxu0 0.0
      %520 = vmatpush1.msra.mxu0 %v303
      %521 = vmatprep.subr.mxu0 0.0
      %522 = vmatpush1.msra.mxu0 %v304
      %523 = vmatprep.subr.mxu0 0.0
      %524 = vmatpush1.msra.mxu0 %v305
      %525 = vmatprep.subr.mxu0 0.0
      %526 = vmatpush1.msra.mxu0 %v306
      %527 = vmatprep.subr.mxu0 0.0
      %528 = vmatpush1.msra.mxu0 %v307
      %529 = vmatprep.subr.mxu0 0.0
      %530 = vmatpush1.msra.mxu0 %v308
      %531 = vmatprep.mubr.f32.mxu0 %v466
      %532 = vmatmul.mubr.f32.gmra.mrb[0].mxu0 %v465
      %v533 = vpop.f32.mrb[0].mxu0
      %v534 = vadd.f32 1e-05, %v533
      %v535 = vpop.f32.mrb[0].mxu0
      %536 = vdwg.mxu0
      %v537 = vrsqrt.pop %v534
      %v539 = vsel %vm108, %v537, 0
      %541 = vmatprep.subr.mxu0 %v310
      %542 = vmatpush1.msra.mxu0 %v309
      %543 = vmatprep.subr.mxu0 %v312
      %544 = vmatpush1.msra.mxu0 %v311
      %545 = vmatprep.subr.mxu0 %v314
      %546 = vmatpush1.msra.mxu0 %v313
      %547 = vmatprep.subr.mxu0 %v316
      %548 = vmatpush1.msra.mxu0 %v315
      %549 = vmatprep.subr.mxu0 0.0
      %550 = vmatpush1.msra.mxu0 0.0
      %551 = vmatprep.subr.mxu0 0.0
      %552 = vmatpush1.msra.mxu0 0.0
      %553 = vmatprep.subr.mxu0 0.0
      %554 = vmatpush1.msra.mxu0 0.0
      %555 = vmatprep.subr.mxu0 0.0
      %556 = vmatpush1.msra.mxu0 0.0
      %557 = vmatprep.subr.mxu0 0.0
      %558 = vmatpush1.msra.mxu0 0.0
      %559 = vmatprep.subr.mxu0 0.0
      %560 = vmatpush1.msra.mxu0 0.0
      %561 = vmatprep.subr.mxu0 0.0
      %562 = vmatpush1.msra.mxu0 0.0
      %563 = vmatprep.subr.mxu0 0.0
      %564 = vmatpush1.msra.mxu0 0.0
      %565 = vmatprep.subr.mxu0 0.0
      %566 = vmatpush1.msra.mxu0 0.0
      %567 = vmatprep.subr.mxu0 0.0
      %568 = vmatpush1.msra.mxu0 0.0
      %569 = vmatprep.subr.mxu0 0.0
      %570 = vmatpush1.msra.mxu0 0.0
      %571 = vmatprep.subr.mxu0 0.0
      %572 = vmatpush1.msra.mxu0 0.0
      %573 = vmatprep.subr.mxu0 0.0
      %574 = vmatpush1.msra.mxu0 0.0
      %575 = vmatprep.subr.mxu0 0.0
      %576 = vmatpush1.msra.mxu0 0.0
      %577 = vmatprep.subr.mxu0 0.0
      %578 = vmatpush1.msra.mxu0 0.0
      %579 = vmatprep.subr.mxu0 0.0
      %580 = vmatpush1.msra.mxu0 0.0
      %581 = vmatprep.subr.mxu0 0.0
      %582 = vmatpush1.msra.mxu0 0.0
      %583 = vmatprep.subr.mxu0 0.0
      %584 = vmatpush1.msra.mxu0 0.0
      %585 = vmatprep.subr.mxu0 0.0
      %586 = vmatpush1.msra.mxu0 0.0
      %587 = vmatprep.subr.mxu0 0.0
      %588 = vmatpush1.msra.mxu0 0.0
      %589 = vmatprep.subr.mxu0 0.0
      %590 = vmatpush1.msra.mxu0 0.0
      %591 = vmatprep.subr.mxu0 0.0
      %592 = vmatpush1.msra.mxu0 0.0
      %593 = vmatprep.subr.mxu0 0.0
      %594 = vmatpush1.msra.mxu0 0.0
      %595 = vmatprep.subr.mxu0 0.0
      %596 = vmatpush1.msra.mxu0 0.0
      %597 = vmatprep.subr.mxu0 0.0
      %598 = vmatpush1.msra.mxu0 0.0
      %599 = vmatprep.subr.mxu0 0.0
      %600 = vmatpush1.msra.mxu0 0.0
      %601 = vmatprep.subr.mxu0 0.0
      %602 = vmatpush1.msra.mxu0 0.0
      %603 = vmatprep.subr.mxu0 0.0
      %604 = vmatpush1.msra.mxu0 0.0
      %605 = vmatprep.mubr.f32.mxu0 0.0
      %606 = vmatmul.mubr.f32.gmra.mrb[0].mxu0 %v539
      %v607 = vpop.f32.mrb[0].mxu0
      %v608 = vadd.f32 0.0, %v607
      %v609 = vpop.f32.mrb[0].mxu0
      %v610 = vadd.f32 0.0, %v609
      %611 = vdwg.mxu0
      %v612 = vmul.f32 %v463, %v608
      %v613 = vmul.f32 %v464, %v610
      %v615 = vlaneseq
      %v616 = vshrl.u32 %v615, 7
      %v617 = vsub.s32 0, %v616
      %v618 = vrot.slane %v317, %v617
      %v619 = vlaneseq
      %v620 = vshrl.u32 %v619, 7
      %v621 = vsub.s32 1, %v620
      %v622 = vrot.slane %v317, %v621
      %v625 = vmul.f32 %v612, %v618
      %v626 = vmul.f32 %v613, %v622
      %v628 = vlaneseq
      %v629 = vshrl.u32 %v628, 7
      %v630 = vsub.s32 0, %v629
      %v631 = vrot.slane %v318, %v630
      %v632 = vlaneseq
      %v633 = vshrl.u32 %v632, 7
      %v634 = vsub.s32 1, %v633
      %v635 = vrot.slane %v318, %v634
      %v638 = vadd.f32 %v625, %v631
      %v639 = vadd.f32 %v626, %v635
      %v640 = vmax.f32 %v638, 0.0
      %v641 = vmax.f32 %v639, 0.0
      %v642 = vld [vmem:[%s10] sm:$0xff]
      %v643 = vld [vmem:[%s10 + $0x8] sm:$0xff]
      %v644 = vld [vmem:[%s10 + $0x10] sm:$0xff]
      %v645 = vld [vmem:[%s10 + $0x18] sm:$0xff]
      %v646 = vld [vmem:[%s10 + $0x20] sm:$0xff]
      %v647 = vld [vmem:[%s10 + $0x28] sm:$0xff]
      %v648 = vld [vmem:[%s10 + $0x30] sm:$0xff]
      %v649 = vld [vmem:[%s10 + $0x38] sm:$0xff]
      %v650 = vld [vmem:[%s10 + $0x40] sm:$0xff]
      %v651 = vld [vmem:[%s10 + $0x48] sm:$0xff]
      %v652 = vld [vmem:[%s10 + $0x50] sm:$0xff]
      %v653 = vld [vmem:[%s10 + $0x58] sm:$0xff]
      %v654 = vld [vmem:[%s10 + $0x60] sm:$0xff]
      %v655 = vld [vmem:[%s10 + $0x68] sm:$0xff]
      %v656 = vld [vmem:[%s10 + $0x70] sm:$0xff]
      %v657 = vld [vmem:[%s10 + $0x78] sm:$0xff]
      %v658 = vld [vmem:[%s10 + $0x80] sm:$0xff]
      %v659 = vld [vmem:[%s10 + $0x88] sm:$0xff]
      %v660 = vld [vmem:[%s10 + $0x90] sm:$0xff]
      %v661 = vld [vmem:[%s10 + $0x98] sm:$0xff]
      %v662 = vld [vmem:[%s10 + $0xa0] sm:$0xff]
      %v663 = vld [vmem:[%s10 + $0xa8] sm:$0xff]
      %v664 = vld [vmem:[%s10 + $0xb0] sm:$0xff]
      %v665 = vld [vmem:[%s10 + $0xb8] sm:$0xff]
      %v666 = vld [vmem:[%s10 + $0xc0] sm:$0xff]
      %v667 = vld [vmem:[%s10 + $0xc8] sm:$0xff]
      %v668 = vld [vmem:[%s10 + $0xd0] sm:$0xff]
      %v669 = vld [vmem:[%s10 + $0xd8] sm:$0xff]
      %v670 = vld [vmem:[%s10 + $0xe0] sm:$0xff]
      %v671 = vld [vmem:[%s10 + $0xe8] sm:$0xff]
      %v672 = vld [vmem:[%s10 + $0xf0] sm:$0xff]
      %v673 = vld [vmem:[%s10 + $0xf8] sm:$0xff]
      %v674 = vld [vmem:[%s11] sm:$0x1]
      %v676 = vlaneseq
      %v677 = vshrl.u32 %v676, 7
      %v678 = vsub.s32 0, %v677
      %v679 = vrot.slane %v674, %v678
      %681 = vmatprep.subr.mxu0 0.0
      %682 = vmatpush1.msra.mxu0 %v642
      %683 = vmatprep.subr.mxu0 0.0
      %684 = vmatpush1.msra.mxu0 %v643
      %685 = vmatprep.subr.mxu0 0.0
      %686 = vmatpush1.msra.mxu0 %v644
      %687 = vmatprep.subr.mxu0 0.0
      %688 = vmatpush1.msra.mxu0 %v645
      %689 = vmatprep.subr.mxu0 0.0
      %690 = vmatpush1.msra.mxu0 %v646
      %691 = vmatprep.subr.mxu0 0.0
      %692 = vmatpush1.msra.mxu0 %v647
      %693 = vmatprep.subr.mxu0 0.0
      %694 = vmatpush1.msra.mxu0 %v648
      %695 = vmatprep.subr.mxu0 0.0
      %696 = vmatpush1.msra.mxu0 %v649
      %697 = vmatprep.subr.mxu0 0.0
      %698 = vmatpush1.msra.mxu0 %v650
      %699 = vmatprep.subr.mxu0 0.0
      %700 = vmatpush1.msra.mxu0 %v651
      %701 = vmatprep.subr.mxu0 0.0
      %702 = vmatpush1.msra.mxu0 %v652
      %703 = vmatprep.subr.mxu0 0.0
      %704 = vmatpush1.msra.mxu0 %v653
      %705 = vmatprep.subr.mxu0 0.0
      %706 = vmatpush1.msra.mxu0 %v654
      %707 = vmatprep.subr.mxu0 0.0
      %708 = vmatpush1.msra.mxu0 %v655
      %709 = vmatprep.subr.mxu0 0.0
      %710 = vmatpush1.msra.mxu0 %v656
      %711 = vmatprep.subr.mxu0 0.0
      %712 = vmatpush1.msra.mxu0 %v657
      %713 = vmatprep.subr.mxu0 0.0
      %714 = vmatpush1.msra.mxu0 %v658
      %715 = vmatprep.subr.mxu0 0.0
      %716 = vmatpush1.msra.mxu0 %v659
      %717 = vmatprep.subr.mxu0 0.0
      %718 = vmatpush1.msra.mxu0 %v660
      %719 = vmatprep.subr.mxu0 0.0
      %720 = vmatpush1.msra.mxu0 %v661
      %721 = vmatprep.subr.mxu0 0.0
      %722 = vmatpush1.msra.mxu0 %v662
      %723 = vmatprep.subr.mxu0 0.0
      %724 = vmatpush1.msra.mxu0 %v663
      %725 = vmatprep.subr.mxu0 0.0
      %726 = vmatpush1.msra.mxu0 %v664
      %727 = vmatprep.subr.mxu0 0.0
      %728 = vmatpush1.msra.mxu0 %v665
      %729 = vmatprep.subr.mxu0 0.0
      %730 = vmatpush1.msra.mxu0 %v666
      %731 = vmatprep.subr.mxu0 0.0
      %732 = vmatpush1.msra.mxu0 %v667
      %733 = vmatprep.subr.mxu0 0.0
      %734 = vmatpush1.msra.mxu0 %v668
      %735 = vmatprep.subr.mxu0 0.0
      %736 = vmatpush1.msra.mxu0 %v669
      %737 = vmatprep.subr.mxu0 0.0
      %738 = vmatpush1.msra.mxu0 %v670
      %739 = vmatprep.subr.mxu0 0.0
      %740 = vmatpush1.msra.mxu0 %v671
      %741 = vmatprep.subr.mxu0 0.0
      %742 = vmatpush1.msra.mxu0 %v672
      %743 = vmatprep.subr.mxu0 0.0
      %744 = vmatpush1.msra.mxu0 %v673
      %745 = vmatprep.mubr.f32.mxu0 %v641
      %746 = vmatmul.mubr.f32.gmra.mrb[0].mxu0 %v640
      %v747 = vpop.f32.mrb[0].mxu0
      %v748 = vadd.f32 %v679, %v747
      %v749 = vpop.f32.mrb[0].mxu0
      %750 = vdwg.mxu0
      %v751 = vld [vmem:[%s14] sm:$0xff]
      %v752 = vld [vmem:[%s14 + $0x8] sm:$0xff]
      %v753 = vld [vmem:[%s14 + $0x10] sm:$0xff]
      %v754 = vld [vmem:[%s14 + $0x18] sm:$0xff]
      %v755 = vld [vmem:[%s14 + $0x20] sm:$0xff]
      %v756 = vld [vmem:[%s14 + $0x28] sm:$0xff]
      %v757 = vld [vmem:[%s14 + $0x30] sm:$0xff]
      %v758 = vld [vmem:[%s14 + $0x38] sm:$0xff]
      %v759 = vld [vmem:[%s14 + $0x40] sm:$0xff]
      %v760 = vld [vmem:[%s14 + $0x48] sm:$0xff]
      %v761 = vld [vmem:[%s14 + $0x50] sm:$0xff]
      %v762 = vld [vmem:[%s14 + $0x58] sm:$0xff]
      %v763 = vld [vmem:[%s14 + $0x60] sm:$0xff]
      %v764 = vld [vmem:[%s14 + $0x68] sm:$0xff]
      %v765 = vld [vmem:[%s14 + $0x70] sm:$0xff]
      %v766 = vld [vmem:[%s14 + $0x78] sm:$0xff]
      %v767 = vld [vmem:[%s15] sm:$0xff]
      %v768 = vld [vmem:[%s15 + $0x8] sm:$0xff]
      %v769 = vld [vmem:[%s12] sm:$0x1]
      %v770 = vld [vmem:[%s13] sm:$0x1]
      %771 = vmatprep.subr.mxu0 0.0
      %772 = vmatpush1.msra.mxu0 %v751
      %773 = vmatprep.subr.mxu0 0.0
      %774 = vmatpush1.msra.mxu0 %v752
      %775 = vmatprep.subr.mxu0 0.0
      %776 = vmatpush1.msra.mxu0 %v753
      %777 = vmatprep.subr.mxu0 0.0
      %778 = vmatpush1.msra.mxu0 %v754
      %779 = vmatprep.subr.mxu0 0.0
      %780 = vmatpush1.msra.mxu0 %v755
      %781 = vmatprep.subr.mxu0 0.0
      %782 = vmatpush1.msra.mxu0 %v756
      %783 = vmatprep.subr.mxu0 0.0
      %784 = vmatpush1.msra.mxu0 %v757
      %785 = vmatprep.subr.mxu0 0.0
      %786 = vmatpush1.msra.mxu0 %v758
      %787 = vmatprep.subr.mxu0 0.0
      %788 = vmatpush1.msra.mxu0 %v759
      %789 = vmatprep.subr.mxu0 0.0
      %790 = vmatpush1.msra.mxu0 %v760
      %791 = vmatprep.subr.mxu0 0.0
      %792 = vmatpush1.msra.mxu0 %v761
      %793 = vmatprep.subr.mxu0 0.0
      %794 = vmatpush1.msra.mxu0 %v762
      %795 = vmatprep.subr.mxu0 0.0
      %796 = vmatpush1.msra.mxu0 %v763
      %797 = vmatprep.subr.mxu0 0.0
      %798 = vmatpush1.msra.mxu0 %v764
      %799 = vmatprep.subr.mxu0 0.0
      %800 = vmatpush1.msra.mxu0 %v765
      %801 = vmatprep.subr.mxu0 0.0
      %802 = vmatpush1.msra.mxu0 %v766
      %803 = vmatprep.subr.mxu0 0.0
      %804 = vmatpush1.msra.mxu0 0.0
      %805 = vmatprep.subr.mxu0 0.0
      %806 = vmatpush1.msra.mxu0 0.0
      %807 = vmatprep.subr.mxu0 0.0
      %808 = vmatpush1.msra.mxu0 0.0
      %809 = vmatprep.subr.mxu0 0.0
      %810 = vmatpush1.msra.mxu0 0.0
      %811 = vmatprep.subr.mxu0 0.0
      %812 = vmatpush1.msra.mxu0 0.0
      %813 = vmatprep.subr.mxu0 0.0
      %814 = vmatpush1.msra.mxu0 0.0
      %815 = vmatprep.subr.mxu0 0.0
      %816 = vmatpush1.msra.mxu0 0.0
      %817 = vmatprep.subr.mxu0 0.0
      %818 = vmatpush1.msra.mxu0 0.0
      %819 = vmatprep.subr.mxu0 0.0
      %820 = vmatpush1.msra.mxu0 0.0
      %821 = vmatprep.subr.mxu0 0.0
      %822 = vmatpush1.msra.mxu0 0.0
      %823 = vmatprep.subr.mxu0 0.0
      %824 = vmatpush1.msra.mxu0 0.0
      %825 = vmatprep.subr.mxu0 0.0
      %826 = vmatpush1.msra.mxu0 0.0
      %827 = vmatprep.subr.mxu0 0.0
      %828 = vmatpush1.msra.mxu0 0.0
      %829 = vmatprep.subr.mxu0 0.0
      %830 = vmatpush1.msra.mxu0 0.0
      %831 = vmatprep.subr.mxu0 0.0
      %832 = vmatpush1.msra.mxu0 0.0
      %833 = vmatprep.subr.mxu0 0.0
      %834 = vmatpush1.msra.mxu0 0.0
      %835 = vmatprep.mubr.f32.mxu0 0.0
      %836 = vmatmul.mubr.f32.gmra.mrb[0].mxu0 %v748
      %v837 = vpop.f32.mrb[0].mxu0
      %v838 = vadd.f32 0.0, %v837
      %v839 = vpop.f32.mrb[0].mxu0
      %840 = vdwg.mxu0
      %vm841 = vcmask 130048
      %v843 = vsel %vm841, %v838, 0
      %845 = vmatprep.subr.mxu0 0.0
      %846 = vmatpush1.msra.mxu0 %v767
      %847 = vmatprep.subr.mxu0 0.0
      %848 = vmatpush1.msra.mxu0 %v768
      %849 = vmatprep.subr.mxu0 0.0
      %850 = vmatpush1.msra.mxu0 0.0
      %851 = vmatprep.subr.mxu0 0.0
      %852 = vmatpush1.msra.mxu0 0.0
      %853 = vmatprep.subr.mxu0 0.0
      %854 = vmatpush1.msra.mxu0 0.0
      %855 = vmatprep.subr.mxu0 0.0
      %856 = vmatpush1.msra.mxu0 0.0
      %857 = vmatprep.subr.mxu0 0.0
      %858 = vmatpush1.msra.mxu0 0.0
      %859 = vmatprep.subr.mxu0 0.0
      %860 = vmatpush1.msra.mxu0 0.0
      %861 = vmatprep.subr.mxu0 0.0
      %862 = vmatpush1.msra.mxu0 0.0
      %863 = vmatprep.subr.mxu0 0.0
      %864 = vmatpush1.msra.mxu0 0.0
      %865 = vmatprep.subr.mxu0 0.0
      %866 = vmatpush1.msra.mxu0 0.0
      %867 = vmatprep.subr.mxu0 0.0
      %868 = vmatpush1.msra.mxu0 0.0
      %869 = vmatprep.subr.mxu0 0.0
      %870 = vmatpush1.msra.mxu0 0.0
      %871 = vmatprep.subr.mxu0 0.0
      %872 = vmatpush1.msra.mxu0 0.0
      %873 = vmatprep.subr.mxu0 0.0
      %874 = vmatpush1.msra.mxu0 0.0
      %875 = vmatprep.subr.mxu0 0.0
      %876 = vmatpush1.msra.mxu0 0.0
      %877 = vmatprep.subr.mxu0 0.0
      %878 = vmatpush1.msra.mxu0 0.0
      %879 = vmatprep.subr.mxu0 0.0
      %880 = vmatpush1.msra.mxu0 0.0
      %881 = vmatprep.subr.mxu0 0.0
      %882 = vmatpush1.msra.mxu0 0.0
      %883 = vmatprep.subr.mxu0 0.0
      %884 = vmatpush1.msra.mxu0 0.0
      %885 = vmatprep.subr.mxu0 0.0
      %886 = vmatpush1.msra.mxu0 0.0
      %887 = vmatprep.subr.mxu0 0.0
      %888 = vmatpush1.msra.mxu0 0.0
      %889 = vmatprep.subr.mxu0 0.0
      %890 = vmatpush1.msra.mxu0 0.0
      %891 = vmatprep.subr.mxu0 0.0
      %892 = vmatpush1.msra.mxu0 0.0
      %893 = vmatprep.subr.mxu0 0.0
      %894 = vmatpush1.msra.mxu0 0.0
      %895 = vmatprep.subr.mxu0 0.0
      %896 = vmatpush1.msra.mxu0 0.0
      %897 = vmatprep.subr.mxu0 0.0
      %898 = vmatpush1.msra.mxu0 0.0
      %899 = vmatprep.subr.mxu0 0.0
      %900 = vmatpush1.msra.mxu0 0.0
      %901 = vmatprep.subr.mxu0 0.0
      %902 = vmatpush1.msra.mxu0 0.0
      %903 = vmatprep.subr.mxu0 0.0
      %904 = vmatpush1.msra.mxu0 0.0
      %905 = vmatprep.subr.mxu0 0.0
      %906 = vmatpush1.msra.mxu0 0.0
      %907 = vmatprep.subr.mxu0 0.0
      %908 = vmatpush1.msra.mxu0 0.0
      %909 = vmatprep.mubr.f32.mxu0 0.0
      %910 = vmatmul.mubr.f32.gmra.mrb[0].mxu0 %v843
      %v911 = vpop.f32.mrb[0].mxu0
      %v912 = vadd.f32 0.0, %v911
      %v913 = vpop.f32.mrb[0].mxu0
      %914 = vdwg.mxu0
      %v915 = vsub.f32 %v748, %v912
      %v916 = vmul.f32 %v915, %v915
      %917 = vmatprep.subr.mxu0 0.0
      %918 = vmatpush1.msra.mxu0 %v751
      %919 = vmatprep.subr.mxu0 0.0
      %920 = vmatpush1.msra.mxu0 %v752
      %921 = vmatprep.subr.mxu0 0.0
      %922 = vmatpush1.msra.mxu0 %v753
      %923 = vmatprep.subr.mxu0 0.0
      %924 = vmatpush1.msra.mxu0 %v754
      %925 = vmatprep.subr.mxu0 0.0
      %926 = vmatpush1.msra.mxu0 %v755
      %927 = vmatprep.subr.mxu0 0.0
      %928 = vmatpush1.msra.mxu0 %v756
      %929 = vmatprep.subr.mxu0 0.0
      %930 = vmatpush1.msra.mxu0 %v757
      %931 = vmatprep.subr.mxu0 0.0
      %932 = vmatpush1.msra.mxu0 %v758
      %933 = vmatprep.subr.mxu0 0.0
      %934 = vmatpush1.msra.mxu0 %v759
      %935 = vmatprep.subr.mxu0 0.0
      %936 = vmatpush1.msra.mxu0 %v760
      %937 = vmatprep.subr.mxu0 0.0
      %938 = vmatpush1.msra.mxu0 %v761
      %939 = vmatprep.subr.mxu0 0.0
      %940 = vmatpush1.msra.mxu0 %v762
      %941 = vmatprep.subr.mxu0 0.0
      %942 = vmatpush1.msra.mxu0 %v763
      %943 = vmatprep.subr.mxu0 0.0
      %944 = vmatpush1.msra.mxu0 %v764
      %945 = vmatprep.subr.mxu0 0.0
      %946 = vmatpush1.msra.mxu0 %v765
      %947 = vmatprep.subr.mxu0 0.0
      %948 = vmatpush1.msra.mxu0 %v766
      %949 = vmatprep.subr.mxu0 0.0
      %950 = vmatpush1.msra.mxu0 0.0
      %951 = vmatprep.subr.mxu0 0.0
      %952 = vmatpush1.msra.mxu0 0.0
      %953 = vmatprep.subr.mxu0 0.0
      %954 = vmatpush1.msra.mxu0 0.0
      %955 = vmatprep.subr.mxu0 0.0
      %956 = vmatpush1.msra.mxu0 0.0
      %957 = vmatprep.subr.mxu0 0.0
      %958 = vmatpush1.msra.mxu0 0.0
      %959 = vmatprep.subr.mxu0 0.0
      %960 = vmatpush1.msra.mxu0 0.0
      %961 = vmatprep.subr.mxu0 0.0
      %962 = vmatpush1.msra.mxu0 0.0
      %963 = vmatprep.subr.mxu0 0.0
      %964 = vmatpush1.msra.mxu0 0.0
      %965 = vmatprep.subr.mxu0 0.0
      %966 = vmatpush1.msra.mxu0 0.0
      %967 = vmatprep.subr.mxu0 0.0
      %968 = vmatpush1.msra.mxu0 0.0
      %969 = vmatprep.subr.mxu0 0.0
      %970 = vmatpush1.msra.mxu0 0.0
      %971 = vmatprep.subr.mxu0 0.0
      %972 = vmatpush1.msra.mxu0 0.0
      %973 = vmatprep.subr.mxu0 0.0
      %974 = vmatpush1.msra.mxu0 0.0
      %975 = vmatprep.subr.mxu0 0.0
      %976 = vmatpush1.msra.mxu0 0.0
      %977 = vmatprep.subr.mxu0 0.0
      %978 = vmatpush1.msra.mxu0 0.0
      %979 = vmatprep.subr.mxu0 0.0
      %980 = vmatpush1.msra.mxu0 0.0
      %981 = vmatprep.mubr.f32.mxu0 0.0
      %982 = vmatmul.mubr.f32.gmra.mrb[0].mxu0 %v916
      %v983 = vpop.f32.mrb[0].mxu0
      %v984 = vadd.f32 1e-05, %v983
      %v985 = vpop.f32.mrb[0].mxu0
      %986 = vdwg.mxu0
      %v987 = vrsqrt.pop %v984
      %v989 = vsel %vm841, %v987, 0
      %991 = vmatprep.subr.mxu0 0.0
      %992 = vmatpush1.msra.mxu0 %v767
      %993 = vmatprep.subr.mxu0 0.0
      %994 = vmatpush1.msra.mxu0 %v768
      %995 = vmatprep.subr.mxu0 0.0
      %996 = vmatpush1.msra.mxu0 0.0
      %997 = vmatprep.subr.mxu0 0.0
      %998 = vmatpush1.msra.mxu0 0.0
      %999 = vmatprep.subr.mxu0 0.0
      %1000 = vmatpush1.msra.mxu0 0.0
      %1001 = vmatprep.subr.mxu0 0.0
      %1002 = vmatpush1.msra.mxu0 0.0
      %1003 = vmatprep.subr.mxu0 0.0
      %1004 = vmatpush1.msra.mxu0 0.0
      %1005 = vmatprep.subr.mxu0 0.0
      %1006 = vmatpush1.msra.mxu0 0.0
      %1007 = vmatprep.subr.mxu0 0.0
      %1008 = vmatpush1.msra.mxu0 0.0
      %1009 = vmatprep.subr.mxu0 0.0
      %1010 = vmatpush1.msra.mxu0 0.0
      %1011 = vmatprep.subr.mxu0 0.0
      %1012 = vmatpush1.msra.mxu0 0.0
      %1013 = vmatprep.subr.mxu0 0.0
      %1014 = vmatpush1.msra.mxu0 0.0
      %1015 = vmatprep.subr.mxu0 0.0
      %1016 = vmatpush1.msra.mxu0 0.0
      %1017 = vmatprep.subr.mxu0 0.0
      %1018 = vmatpush1.msra.mxu0 0.0
      %1019 = vmatprep.subr.mxu0 0.0
      %1020 = vmatpush1.msra.mxu0 0.0
      %1021 = vmatprep.subr.mxu0 0.0
      %1022 = vmatpush1.msra.mxu0 0.0
      %1023 = vmatprep.subr.mxu0 0.0
      %1024 = vmatpush1.msra.mxu0 0.0
      %1025 = vmatprep.subr.mxu0 0.0
      %1026 = vmatpush1.msra.mxu0 0.0
      %1027 = vmatprep.subr.mxu0 0.0
      %1028 = vmatpush1.msra.mxu0 0.0
      %1029 = vmatprep.subr.mxu0 0.0
      %1030 = vmatpush1.msra.mxu0 0.0
      %1031 = vmatprep.subr.mxu0 0.0
      %1032 = vmatpush1.msra.mxu0 0.0
      %1033 = vmatprep.subr.mxu0 0.0
      %1034 = vmatpush1.msra.mxu0 0.0
      %1035 = vmatprep.subr.mxu0 0.0
      %1036 = vmatpush1.msra.mxu0 0.0
      %1037 = vmatprep.subr.mxu0 0.0
      %1038 = vmatpush1.msra.mxu0 0.0
      %1039 = vmatprep.subr.mxu0 0.0
      %1040 = vmatpush1.msra.mxu0 0.0
      %1041 = vmatprep.subr.mxu0 0.0
      %1042 = vmatpush1.msra.mxu0 0.0
      %1043 = vmatprep.subr.mxu0 0.0
      %1044 = vmatpush1.msra.mxu0 0.0
      %1045 = vmatprep.subr.mxu0 0.0
      %1046 = vmatpush1.msra.mxu0 0.0
      %1047 = vmatprep.subr.mxu0 0.0
      %1048 = vmatpush1.msra.mxu0 0.0
      %1049 = vmatprep.subr.mxu0 0.0
      %1050 = vmatpush1.msra.mxu0 0.0
      %1051 = vmatprep.subr.mxu0 0.0
      %1052 = vmatpush1.msra.mxu0 0.0
      %1053 = vmatprep.subr.mxu0 0.0
      %1054 = vmatpush1.msra.mxu0 0.0
      %1055 = vmatprep.mubr.f32.mxu0 0.0
      %1056 = vmatmul.mubr.f32.gmra.mrb[0].mxu0 %v989
      %v1057 = vpop.f32.mrb[0].mxu0
      %v1058 = vadd.f32 0.0, %v1057
      %v1059 = vpop.f32.mrb[0].mxu0
      %1060 = vdwg.mxu0
      %v1061 = vmul.f32 %v915, %v1058
      %v1063 = vlaneseq
      %v1064 = vshrl.u32 %v1063, 7
      %v1065 = vsub.s32 0, %v1064
      %v1066 = vrot.slane %v769, %v1065
      %v1068 = vmul.f32 %v1061, %v1066
      %v1070 = vlaneseq
      %v1071 = vshrl.u32 %v1070, 7
      %v1072 = vsub.s32 0, %v1071
      %v1073 = vrot.slane %v770, %v1072
      %v1075 = vadd.f32 %v1068, %v1073
      %v1076 = vmax.f32 %v1075, 0.0
      %v1077 = vld [vmem:[%s16] sm:$0xff]
      %v1078 = vld [vmem:[%s16 + $0x8] sm:$0xff]
      %v1079 = vld [vmem:[%s16 + $0x10] sm:$0xff]
      %v1080 = vld [vmem:[%s16 + $0x18] sm:$0xff]
      %v1081 = vld [vmem:[%s16 + $0x20] sm:$0xff]
      %v1082 = vld [vmem:[%s16 + $0x28] sm:$0xff]
      %v1083 = vld [vmem:[%s16 + $0x30] sm:$0xff]
      %v1084 = vld [vmem:[%s16 + $0x38] sm:$0xff]
      %v1085 = vld [vmem:[%s16 + $0x40] sm:$0xff]
      %v1086 = vld [vmem:[%s16 + $0x48] sm:$0xff]
      %v1087 = vld [vmem:[%s16 + $0x50] sm:$0xff]
      %v1088 = vld [vmem:[%s16 + $0x58] sm:$0xff]
      %v1089 = vld [vmem:[%s16 + $0x60] sm:$0xff]
      %v1090 = vld [vmem:[%s16 + $0x68] sm:$0xff]
      %v1091 = vld [vmem:[%s16 + $0x70] sm:$0xff]
      %v1092 = vld [vmem:[%s16 + $0x78] sm:$0xff]
      %v1093 = vld [vmem:[%s17] sm:$0x1]
      %v1095 = vlaneseq
      %v1096 = vshrl.u32 %v1095, 7
      %v1097 = vsub.s32 0, %v1096
      %v1098 = vrot.slane %v1093, %v1097
      %1100 = vmatprep.subr.mxu0 0.0
      %1101 = vmatpush1.msra.mxu0 %v1077
      %1102 = vmatprep.subr.mxu0 0.0
      %1103 = vmatpush1.msra.mxu0 %v1078
      %1104 = vmatprep.subr.mxu0 0.0
      %1105 = vmatpush1.msra.mxu0 %v1079
      %1106 = vmatprep.subr.mxu0 0.0
      %1107 = vmatpush1.msra.mxu0 %v1080
      %1108 = vmatprep.subr.mxu0 0.0
      %1109 = vmatpush1.msra.mxu0 %v1081
      %1110 = vmatprep.subr.mxu0 0.0
      %1111 = vmatpush1.msra.mxu0 %v1082
      %1112 = vmatprep.subr.mxu0 0.0
      %1113 = vmatpush1.msra.mxu0 %v1083
      %1114 = vmatprep.subr.mxu0 0.0
      %1115 = vmatpush1.msra.mxu0 %v1084
      %1116 = vmatprep.subr.mxu0 0.0
      %1117 = vmatpush1.msra.mxu0 %v1085
      %1118 = vmatprep.subr.mxu0 0.0
      %1119 = vmatpush1.msra.mxu0 %v1086
      %1120 = vmatprep.subr.mxu0 0.0
      %1121 = vmatpush1.msra.mxu0 %v1087
      %1122 = vmatprep.subr.mxu0 0.0
      %1123 = vmatpush1.msra.mxu0 %v1088
      %1124 = vmatprep.subr.mxu0 0.0
      %1125 = vmatpush1.msra.mxu0 %v1089
      %1126 = vmatprep.subr.mxu0 0.0
      %1127 = vmatpush1.msra.mxu0 %v1090
      %1128 = vmatprep.subr.mxu0 0.0
      %1129 = vmatpush1.msra.mxu0 %v1091
      %1130 = vmatprep.subr.mxu0 0.0
      %1131 = vmatpush1.msra.mxu0 %v1092
      %1132 = vmatprep.subr.mxu0 0.0
      %1133 = vmatpush1.msra.mxu0 0.0
      %1134 = vmatprep.subr.mxu0 0.0
      %1135 = vmatpush1.msra.mxu0 0.0
      %1136 = vmatprep.subr.mxu0 0.0
      %1137 = vmatpush1.msra.mxu0 0.0
      %1138 = vmatprep.subr.mxu0 0.0
      %1139 = vmatpush1.msra.mxu0 0.0
      %1140 = vmatprep.subr.mxu0 0.0
      %1141 = vmatpush1.msra.mxu0 0.0
      %1142 = vmatprep.subr.mxu0 0.0
      %1143 = vmatpush1.msra.mxu0 0.0
      %1144 = vmatprep.subr.mxu0 0.0
      %1145 = vmatpush1.msra.mxu0 0.0
      %1146 = vmatprep.subr.mxu0 0.0
      %1147 = vmatpush1.msra.mxu0 0.0
      %1148 = vmatprep.subr.mxu0 0.0
      %1149 = vmatpush1.msra.mxu0 0.0
      %1150 = vmatprep.subr.mxu0 0.0
      %1151 = vmatpush1.msra.mxu0 0.0
      %1152 = vmatprep.subr.mxu0 0.0
      %1153 = vmatpush1.msra.mxu0 0.0
      %1154 = vmatprep.subr.mxu0 0.0
      %1155 = vmatpush1.msra.mxu0 0.0
      %1156 = vmatprep.subr.mxu0 0.0
      %1157 = vmatpush1.msra.mxu0 0.0
      %1158 = vmatprep.subr.mxu0 0.0
      %1159 = vmatpush1.msra.mxu0 0.0
      %1160 = vmatprep.subr.mxu0 0.0
      %1161 = vmatpush1.msra.mxu0 0.0
      %1162 = vmatprep.subr.mxu0 0.0
      %1163 = vmatpush1.msra.mxu0 0.0
      %1164 = vmatprep.mubr.f32.mxu0 0.0
      %1165 = vmatmul.mubr.f32.gmra.mrb[0].mxu0 %v1076
      %v1166 = vpop.f32.mrb[0].mxu0
      %v1167 = vadd.f32 %v1098, %v1166
      %v1168 = vpop.f32.mrb[0].mxu0
      %1169 = vdwg.mxu0
      %1170 = vst [vmem:[#allocation3] sm:$0x3] %v1167
    $region81: #{classification_head.1} parent=1 // pred_fallthru
      _
    // Predicated region
    $region82: #{classification_head.1} parent=1 // pred_check
      _
    $region83: #{classification_head.1} parent=1 // pred_check_branch
      %1172 = sbr.rel (0) target = $region85
    $region84: #{classification_head.1} parent=1 // pred_region
      %s1174 = ssub.s32 32, 32
      %1175 = vsyncadd [#allocation4], %s1174
      %s1177 = sshll.u32 [#allocation3], 4
      %s1178 = int_to_ptr.vmem [resolvable:$true] %s1177
      %1180 = dma.vmem_to_hbm [thread:$0]  %s1178, 32, %s18, [#allocation4]
    $region85: #{classification_head.1} parent=1 // pred_fallthru
      _
    // Predicated region
    $region86: #{classification_head.1} parent=1 // pred_check
      _
    $region87: #{classification_head.1} parent=1 // pred_check_branch
      %1182 = sbr.rel (0) target = $region89
    $region88: #{classification_head.1} parent=1 // pred_region
      %1183 = dma.done [#allocation4], 32
    $region89: #{classification_head.1} parent=1 // pred_fallthru
      _
    %1184 = vsyncpa [#allocation4], 1

</llo_original>
